<compile_context>
chip_gen: v7x
topology: tpu7x:2x2x1
jax: 0.10.0
libtpu: 0.0.40
codegen_flags: <defaults>
</compile_context>

<pallas_src>
import numpy as np
import jax
import jax.numpy as jnp
from jax.experimental import pallas as pl
from jax.experimental.pallas import tpu as pltpu


def _largest_divisor_leq(n, cap):
    """Largest divisor of n that is <= cap (>= 1). Gives exact tiles (no remainder)."""
    best = 1
    for d in range(1, min(n, cap) + 1):
        if n % d == 0:
            best = d
    return best


# --------------------------------------------------------------------------
# Kernel 1: fused conv stack  (n_layers x [Conv1d(k=3,pad=1) + bias + ReLU + mask])
# --------------------------------------------------------------------------
def _make_conv_stack_kernel(n_layers):
    def kernel(x_ref, mask_ref, *args):
        w_refs = args[:n_layers]
        b_refs = args[n_layers:2 * n_layers]
        o_ref = args[2 * n_layers]

        BN, T, _ = x_ref.shape
        mask = mask_ref[...]                                   # [BN, T, 1]
        h = x_ref[...] * mask                                  # zeroed pad == per-seq slicing

        for l in range(n_layers):
            C = h.shape[-1]
            cout = w_refs[l].shape[-1]
            zrow = jnp.zeros((BN, 1, C), jnp.float32)
            h_prev = jnp.concatenate([zrow, h[:, :-1, :]], axis=1)   # x[t-1]
            h_next = jnp.concatenate([h[:, 1:, :], zrow], axis=1)    # x[t+1]
            # Fused 3-tap conv: single MXU matmul with K = 3*C
            # (tap-major row layout matches w_flat = [tap0|tap1|tap2] rows).
            h3 = jnp.concatenate([h_prev, h, h_next], axis=-1).reshape(BN * T, 3 * C)
            y = jnp.dot(h3, w_refs[l][...], preferred_element_type=jnp.float32) + b_refs[l][...]
            # ReLU; dropout = eval-mode identity; mask reproduces pad semantics.
            h = jnp.maximum(y, 0.0).reshape(BN, T, cout) * mask

        o_ref[...] = h.astype(o_ref.dtype)

    return kernel


def conv_stack(x_ntc, mask_nt1, conv_params):
    N, T, Cin = x_ntc.shape
    n_layers = len(conv_params)
    Cout = conv_params[-1][0].shape[1]
    BN = _largest_divisor_leq(N, 8)                            # batch tile (parallel axis)
    grid = (N // BN,)

    in_specs = [pl.BlockSpec((BN, T, Cin), lambda i: (i, 0, 0)),
                pl.BlockSpec((BN, T, 1), lambda i: (i, 0, 0))]
    in_specs += [pl.BlockSpec(w.shape, lambda i: (0, 0)) for (w, _) in conv_params]
    in_specs += [pl.BlockSpec(b.shape, lambda i: (0, 0)) for (_, b) in conv_params]

    flops = sum(2 * N * T * w.shape[0] * w.shape[1] for (w, _) in conv_params)
    bytes_accessed = 4 * (N * T * Cin + N * T * Cout
                          + sum(int(w.size) + int(b.size) for (w, b) in conv_params))

    return pl.pallas_call(
        _make_conv_stack_kernel(n_layers),
        out_shape=jax.ShapeDtypeStruct((N, T, Cout), jnp.float32),
        grid=grid,
        in_specs=in_specs,
        out_specs=pl.BlockSpec((BN, T, Cout), lambda i: (i, 0, 0)),
        compiler_params=pltpu.CompilerParams(
            dimension_semantics=("parallel",),
            vmem_limit_bytes=64 * 1024 * 1024),
        cost_estimate=pl.CostEstimate(flops=int(flops), transcendentals=0,
                                      bytes_accessed=int(bytes_accessed)),
    )(x_ntc, mask_nt1,
      *[w for (w, _) in conv_params], *[b for (_, b) in conv_params])


# --------------------------------------------------------------------------
# Kernel 2: bidirectional LSTM, packed-sequence semantics via masking.
#   - per-chunk gate projections into bounded VMEM scratch
#   - interleaved fwd/bwd recurrence in one fori_loop
#   - chunk-buffered output stores
# --------------------------------------------------------------------------
def _make_bilstm_kernel(T, TC, H):
    n_chunks = T // TC

    def kernel(x_ref, mask_ref,
               wih_f_ref, whh_f_ref, b_f_ref,
               wih_b_ref, whh_b_ref, b_b_ref,
               of_ref, ob_ref,
               gxf_ref, gxb_ref, obf_ref, obb_ref):
        _, N, C = x_ref.shape
        whh_f = whh_f_ref[...]                                  # hoisted loop constants
        whh_b = whh_b_ref[...]

        def cell(gx, h, c, whh):
            gates = gx + jnp.dot(h, whh, preferred_element_type=jnp.float32)
            i = jax.nn.sigmoid(gates[:, 0 * H:1 * H])
            f = jax.nn.sigmoid(gates[:, 1 * H:2 * H])
            g = jnp.tanh(gates[:, 2 * H:3 * H])
            o = jax.nn.sigmoid(gates[:, 3 * H:4 * H])
            c_new = f * c + i * g
            h_new = o * jnp.tanh(c_new)
            return h_new, c_new

        def chunk_body(ci, carry):
            hf, cf, hb, cb = carry
            tf0 = ci * TC                  # forward chunk covers times [tf0, tf0+TC)
            tb0 = T - (ci + 1) * TC        # backward chunk covers times [tb0, tb0+TC)

            # Per-chunk input projections (one big MXU dot per direction).
            xf = x_ref[pl.ds(tf0, TC)].reshape(TC * N, C)
            xb = x_ref[pl.ds(tb0, TC)].reshape(TC * N, C)
            gxf_ref[...] = (jnp.dot(xf, wih_f_ref[...], preferred_element_type=jnp.float32)
                            + b_f_ref[...]).reshape(TC, N, 4 * H)
            gxb_ref[...] = (jnp.dot(xb, wih_b_ref[...], preferred_element_type=jnp.float32)
                            + b_b_ref[...]).reshape(TC, N, 4 * H)

            def step_body(s, c2):
                hf, cf, hb, cb = c2
                # ---- forward direction, time t = tf0 + s ----
                mf = mask_ref[tf0 + s]                          # [N, 1]
                hf_new, cf_new = cell(gxf_ref[s], hf, cf, whh_f)
                hf = mf * hf_new + (1.0 - mf) * hf
                cf = mf * cf_new + (1.0 - mf) * cf
                obf_ref[s] = hf * mf
                # ---- backward direction, time t = tb0 + (TC-1-s) ----
                sb = TC - 1 - s
                mb = mask_ref[tb0 + sb]
                hb_new, cb_new = cell(gxb_ref[sb], hb, cb, whh_b)
                hb = mb * hb_new + (1.0 - mb) * hb
                cb = mb * cb_new + (1.0 - mb) * cb
                obb_ref[sb] = hb * mb
                return hf, cf, hb, cb

            carry = jax.lax.fori_loop(0, TC, step_body, (hf, cf, hb, cb))

            # Flush buffered chunk outputs (large stores instead of T tiny ones).
            of_ref[pl.ds(tf0, TC)] = obf_ref[...]
            ob_ref[pl.ds(tb0, TC)] = obb_ref[...]
            return carry

        h0 = jnp.zeros((N, H), jnp.float32)
        c0 = jnp.zeros((N, H), jnp.float32)
        jax.lax.fori_loop(0, n_chunks, chunk_body, (h0, c0, h0, c0))

    return kernel


def bilstm(x_tnc, mask_tn1, wih_f, whh_f, b_f, wih_b, whh_b, b_b):
    T, N, C = x_tnc.shape
    H = whh_f.shape[0]
    TC = _largest_divisor_leq(T, 128)                           # time chunk (bounds scratch VMEM)

    flops = 2 * T * N * (2 * C * 4 * H + 2 * H * 4 * H)
    transcend = 10 * T * N * H
    bytes_accessed = 4 * (T * N * C + 2 * T * N * H + T * N
                          + 2 * (C * 4 * H + H * 4 * H + 4 * H))

    return pl.pallas_call(
        _make_bilstm_kernel(T, TC, H),
        out_shape=(jax.ShapeDtypeStruct((T, N, H), jnp.float32),
                   jax.ShapeDtypeStruct((T, N, H), jnp.float32)),
        in_specs=[pl.BlockSpec(memory_space=pltpu.MemorySpace.VMEM)] * 8,
        out_specs=(pl.BlockSpec(memory_space=pltpu.MemorySpace.VMEM),
                   pl.BlockSpec(memory_space=pltpu.MemorySpace.VMEM)),
        scratch_shapes=[pltpu.VMEM((TC, N, 4 * H), jnp.float32),   # fwd gate chunk
                        pltpu.VMEM((TC, N, 4 * H), jnp.float32),   # bwd gate chunk
                        pltpu.VMEM((TC, N, H), jnp.float32),       # fwd output chunk buffer
                        pltpu.VMEM((TC, N, H), jnp.float32)],      # bwd output chunk buffer
        compiler_params=pltpu.CompilerParams(vmem_limit_bytes=64 * 1024 * 1024),
        cost_estimate=pl.CostEstimate(flops=int(flops), transcendentals=int(transcend),
                                      bytes_accessed=int(bytes_accessed)),
    )(x_tnc, mask_tn1, wih_f, whh_f, b_f, wih_b, whh_b, b_b)


# --------------------------------------------------------------------------
# Kernel 3: Linear head over every (padded) timestep, gridded over time tiles.
# --------------------------------------------------------------------------
def _dense_kernel(of_ref, ob_ref, w_ref, b_ref, o_ref):
    TT, N, H = of_ref.shape
    D = o_ref.shape[-1]
    h = jnp.concatenate([of_ref[...], ob_ref[...]], axis=-1).reshape(TT * N, 2 * H)
    y = jnp.dot(h, w_ref[...], preferred_element_type=jnp.float32) + b_ref[...]
    o_ref[...] = y.reshape(TT, N, D).astype(o_ref.dtype)


def dense(of_tnh, ob_tnh, w, b):
    T, N, H = of_tnh.shape
    D = w.shape[1]
    TT = _largest_divisor_leq(T, 256)
    flops = 2 * T * N * 2 * H * D
    bytes_accessed = 4 * (2 * T * N * H + T * N * D + int(w.size) + int(b.size))
    return pl.pallas_call(
        _dense_kernel,
        out_shape=jax.ShapeDtypeStruct((T, N, D), jnp.float32),
        grid=(T // TT,),
        in_specs=[pl.BlockSpec((TT, N, H), lambda i: (i, 0, 0)),
                  pl.BlockSpec((TT, N, H), lambda i: (i, 0, 0)),
                  pl.BlockSpec(w.shape, lambda i: (0, 0)),
                  pl.BlockSpec(b.shape, lambda i: (0, 0))],
        out_specs=pl.BlockSpec((TT, N, D), lambda i: (i, 0, 0)),
        compiler_params=pltpu.CompilerParams(dimension_semantics=("parallel",)),
        cost_estimate=pl.CostEstimate(flops=int(flops), transcendentals=0,
                                      bytes_accessed=int(bytes_accessed)),
    )(of_tnh, ob_tnh, w, b)


# --------------------------------------------------------------------------
# Full forward (glue: transposes, masks, parameter plumbing).  jit-compatible.
# --------------------------------------------------------------------------
def conv_lstm_linear_forward(params, context_nct, lens):
    """context_nct: [N, in_dim, T] (PyTorch layout, T = padded length), lens: [N] int32.
    Returns [N, out_dim, T] (== PyTorch batch>1 output when input is padded to max(lens))."""
    N, _, T = context_nct.shape
    x = jnp.transpose(context_nct, (0, 2, 1))                           # [N, T, in_dim]
    mask_nt1 = (jnp.arange(T)[None, :] < lens[:, None]).astype(jnp.float32)[..., None]

    h = conv_stack(x, mask_nt1, params["convs"])                        # [N, T, n_channels]

    h_tnc = jnp.transpose(h, (1, 0, 2))                                 # [T, N, n_channels]
    mask_tn1 = jnp.transpose(mask_nt1, (1, 0, 2))                       # [T, N, 1]
    p = params["lstm"]
    of, ob = bilstm(h_tnc, mask_tn1,
                    p["wih_f"], p["whh_f"], p["b_f"],
                    p["wih_b"], p["whh_b"], p["b_b"])                   # [T, N, H] x2

    wd, bd = params["dense"]
    y = dense(of, ob, wd, bd)                                           # [T, N, out_dim]
    return jnp.transpose(y, (1, 2, 0))                                  # [N, out_dim, T]


# --------------------------------------------------------------------------
# Deterministic synthetic parameter initialization (matches PyTorch init schemes)
# --------------------------------------------------------------------------
def xavier_uniform(key, shape, gain, fan_in, fan_out):
    a = gain * (6.0 / (fan_in + fan_out)) ** 0.5
    return jax.random.uniform(key, shape, jnp.float32, -a, a)


def init_params(key, in_dim, out_dim, n_layers, n_channels, kernel_size):
    H = n_channels // 2
    keys = jax.random.split(key, 4 * n_layers + 16)
    k_iter = iter(keys)

    convs = []
    for i in range(n_layers):
        cin = in_dim if i == 0 else n_channels
        cout = n_channels
        gain = np.sqrt(2.0)                                  # w_init_gain='relu'
        w = xavier_uniform(next(k_iter), (cout, cin, kernel_size), gain,
                           cin * kernel_size, cout * kernel_size)
        # effective weight under weight_norm at init equals w itself (g = ||v||)
        w_flat = jnp.transpose(w, (2, 1, 0)).reshape(kernel_size * cin, cout)  # tap-major rows
        bound = 1.0 / np.sqrt(cin * kernel_size)
        b = jax.random.uniform(next(k_iter), (1, cout), jnp.float32, -bound, bound)
        convs.append((w_flat, b))

    def lstm_dir():
        bound = 1.0 / np.sqrt(H)
        w_ih = jax.random.uniform(next(k_iter), (4 * H, n_channels), jnp.float32, -bound, bound)
        w_hh = jax.random.uniform(next(k_iter), (4 * H, H), jnp.float32, -bound, bound)
        b_ih = jax.random.uniform(next(k_iter), (4 * H,), jnp.float32, -bound, bound)
        b_hh = jax.random.uniform(next(k_iter), (4 * H,), jnp.float32, -bound, bound)
        # spectral_norm on weight_hh: divide by largest singular value (exact SVD here)
        sigma = float(np.linalg.svd(np.asarray(w_hh), compute_uv=False)[0])
        w_hh = w_hh / sigma
        return (jnp.transpose(w_ih), jnp.transpose(w_hh),
                (b_ih + b_hh).reshape(1, 4 * H))

    wih_f, whh_f, b_f = lstm_dir()
    wih_b, whh_b, b_b = lstm_dir()
    lstm = dict(wih_f=wih_f, whh_f=whh_f, b_f=b_f,
                wih_b=wih_b, whh_b=whh_b, b_b=b_b)

    bound = 1.0 / np.sqrt(n_channels)
    wd = jax.random.uniform(next(k_iter), (out_dim, n_channels), jnp.float32, -bound, bound)
    bd = jax.random.uniform(next(k_iter), (1, out_dim), jnp.float32, -bound, bound)

    return dict(convs=convs, lstm=lstm, dense=(jnp.transpose(wd), bd))


if __name__ == "__main__":
    key = jax.random.PRNGKey(0)
    N, in_dim, T = 2, 8, 16
    out_dim, n_layers, n_channels, kernel_size = 8, 2, 32, 3

    k_param, k_data = jax.random.split(key)
    params = init_params(k_param, in_dim, out_dim, n_layers, n_channels, kernel_size)

    context = jax.random.normal(k_data, (N, in_dim, T), jnp.float32)   # PyTorch [N, D, T]
    lens = jnp.array([16, 12], dtype=jnp.int32)                        # max(lens) == T (padded)

    fwd = jax.jit(conv_lstm_linear_forward)                            # T is static -> jit-safe
    out = jax.block_until_ready(fwd(params, context, lens))
    assert out.shape == (N, out_dim, T)
    assert bool(jnp.all(jnp.isfinite(out)))
    print("KERNEL_OK")
</pallas_src>

<mosaic_0001>
module attributes {stable_mosaic.version = 11 : i64} {
  func.func @_dense_kernel(%arg0: i32, %arg1: memref<16x2x16xf32, #tpu.memory_space<vmem>>, %arg2: memref<16x2x16xf32, #tpu.memory_space<vmem>>, %arg3: memref<32x8xf32, #tpu.memory_space<vmem>>, %arg4: memref<1x8xf32, #tpu.memory_space<vmem>>, %arg5: memref<16x2x8xf32, #tpu.memory_space<vmem>>) attributes {dimension_semantics = [#tpu.dimension_semantics<parallel>], iteration_bounds = array<i64: 1>, scalar_prefetch = 0 : i64, scratch_operands = 0 : i64, tpu.core_type = #tpu.core_type<tc>, window_params = [{transform_indices = @transform_0, window_bounds = array<i64: 16, 2, 16>}, {transform_indices = @transform_1, window_bounds = array<i64: 16, 2, 16>}, {pipeline_mode = #tpu.pipeline_mode<synchronous>, transform_indices = @transform_2, window_bounds = array<i64: 32, 8>}, {pipeline_mode = #tpu.pipeline_mode<synchronous>, transform_indices = @transform_3, window_bounds = array<i64: 1, 8>}, {transform_indices = @transform_4, window_bounds = array<i64: 16, 2, 8>}]} {
    %c0 = arith.constant 0 : index
    %c0_0 = arith.constant 0 : index
    %c0_1 = arith.constant 0 : index
    %0 = vector.load %arg1[%c0, %c0_0, %c0_1] : memref<16x2x16xf32, #tpu.memory_space<vmem>>, vector<16x2x16xf32>
    %c0_2 = arith.constant 0 : index
    %c0_3 = arith.constant 0 : index
    %c0_4 = arith.constant 0 : index
    %1 = vector.load %arg2[%c0_2, %c0_3, %c0_4] : memref<16x2x16xf32, #tpu.memory_space<vmem>>, vector<16x2x16xf32>
    %2 = tpu.concatenate %0, %1 in 2 : vector<16x2x16xf32>, vector<16x2x16xf32> -> vector<16x2x32xf32>
    %3 = vector.shape_cast %2 : vector<16x2x32xf32> to vector<32x32xf32>
    %c0_5 = arith.constant 0 : index
    %c0_6 = arith.constant 0 : index
    %4 = vector.load %arg3[%c0_5, %c0_6] : memref<32x8xf32, #tpu.memory_space<vmem>>, vector<32x8xf32>
    %cst = arith.constant dense<0.000000e+00> : vector<32x8xf32>
    %5 = tpu.matmul %3, %4, %cst {dimension_numbers = #tpu.dot_dimension_numbers<[1], [0], [0], [1], [0, 0, 1, 1], [], []>} : vector<32x32xf32>, vector<32x8xf32>, vector<32x8xf32> -> vector<32x8xf32>
    %c0_7 = arith.constant 0 : index
    %c0_8 = arith.constant 0 : index
    %6 = vector.load %arg4[%c0_7, %c0_8] : memref<1x8xf32, #tpu.memory_space<vmem>>, vector<1x8xf32>
    %7 = vector.broadcast %6 : vector<1x8xf32> to vector<32x8xf32>
    %8 = arith.addf %5, %7 : vector<32x8xf32>
    %9 = vector.shape_cast %8 : vector<32x8xf32> to vector<16x2x8xf32>
    %c0_9 = arith.constant 0 : index
    %c0_10 = arith.constant 0 : index
    %c0_11 = arith.constant 0 : index
    %10 = vector.load %arg5[%c0_9, %c0_10, %c0_11] : memref<16x2x8xf32, #tpu.memory_space<vmem>>, vector<16x2x8xf32>
    tpu.vector_store %arg5[%c0_9, %c0_10, %c0_11], %9 {strides = array<i32>} : memref<16x2x8xf32, #tpu.memory_space<vmem>>, vector<16x2x8xf32>,
    return
  }
  func.func @transform_0(%arg0: i32) -> (i32, i32, i32) {
    %c0_i32 = arith.constant 0 : i32
    %c0_i32_0 = arith.constant 0 : i32
    %c0_i32_1 = arith.constant 0 : i32
    return %arg0, %c0_i32, %c0_i32_0 : i32, i32, i32
  }
  func.func @transform_1(%arg0: i32) -> (i32, i32, i32) {
    %c0_i32 = arith.constant 0 : i32
    %c0_i32_0 = arith.constant 0 : i32
    %c0_i32_1 = arith.constant 0 : i32
    return %arg0, %c0_i32, %c0_i32_0 : i32, i32, i32
  }
  func.func @transform_2(%arg0: i32) -> (i32, i32) {
    %c0_i32 = arith.constant 0 : i32
    %c0_i32_0 = arith.constant 0 : i32
    %c0_i32_1 = arith.constant 0 : i32
    return %c0_i32, %c0_i32_0 : i32, i32
  }
  func.func @transform_3(%arg0: i32) -> (i32, i32) {
    %c0_i32 = arith.constant 0 : i32
    %c0_i32_0 = arith.constant 0 : i32
    %c0_i32_1 = arith.constant 0 : i32
    return %c0_i32, %c0_i32_0 : i32, i32
  }
  func.func @transform_4(%arg0: i32) -> (i32, i32, i32) {
    %c0_i32 = arith.constant 0 : i32
    %c0_i32_0 = arith.constant 0 : i32
    %c0_i32_1 = arith.constant 0 : i32
    return %arg0, %c0_i32, %c0_i32_0 : i32, i32, i32
  }
}

module attributes {stable_mosaic.version = 11 : i64} {
  func.func @kernel(%arg0: i32, %arg1: memref<2x16x8xf32, #tpu.memory_space<vmem>>, %arg2: memref<2x16x1xf32, #tpu.memory_space<vmem>>, %arg3: memref<24x32xf32, #tpu.memory_space<vmem>>, %arg4: memref<96x32xf32, #tpu.memory_space<vmem>>, %arg5: memref<1x32xf32, #tpu.memory_space<vmem>>, %arg6: memref<1x32xf32, #tpu.memory_space<vmem>>, %arg7: memref<2x16x32xf32, #tpu.memory_space<vmem>>) attributes {dimension_semantics = [#tpu.dimension_semantics<parallel>], iteration_bounds = array<i64: 1>, scalar_prefetch = 0 : i64, scratch_operands = 0 : i64, tpu.core_type = #tpu.core_type<tc>, window_params = [{transform_indices = @transform_0, window_bounds = array<i64: 2, 16, 8>}, {transform_indices = @transform_1, window_bounds = array<i64: 2, 16, 1>}, {pipeline_mode = #tpu.pipeline_mode<synchronous>, transform_indices = @transform_2, window_bounds = array<i64: 24, 32>}, {pipeline_mode = #tpu.pipeline_mode<synchronous>, transform_indices = @transform_3, window_bounds = array<i64: 96, 32>}, {pipeline_mode = #tpu.pipeline_mode<synchronous>, transform_indices = @transform_4, window_bounds = array<i64: 1, 32>}, {pipeline_mode = #tpu.pipeline_mode<synchronous>, transform_indices = @transform_5, window_bounds = array<i64: 1, 32>}, {transform_indices = @transform_6, window_bounds = array<i64: 2, 16, 32>}]} {
    %c0 = arith.constant 0 : index
    %c0_0 = arith.constant 0 : index
    %c0_1 = arith.constant 0 : index
    %0 = vector.load %arg2[%c0, %c0_0, %c0_1] : memref<2x16x1xf32, #tpu.memory_space<vmem>>, vector<2x16x1xf32>
    %c0_2 = arith.constant 0 : index
    %c0_3 = arith.constant 0 : index
    %c0_4 = arith.constant 0 : index
    %1 = vector.load %arg1[%c0_2, %c0_3, %c0_4] : memref<2x16x8xf32, #tpu.memory_space<vmem>>, vector<2x16x8xf32>
    %2 = vector.broadcast %0 : vector<2x16x1xf32> to vector<2x16x8xf32>
    %3 = arith.mulf %1, %2 : vector<2x16x8xf32>
    %cst = arith.constant 0.000000e+00 : f32
    %4 = vector.broadcast %cst : f32 to vector<2x1x8xf32>
    %5 = vector.extract_strided_slice %3 {offsets = [0, 0, 0], sizes = [2, 15, 8], strides = [1, 1, 1]} : vector<2x16x8xf32> to vector<2x15x8xf32>
    %6 = tpu.concatenate %4, %5 in 1 : vector<2x1x8xf32>, vector<2x15x8xf32> -> vector<2x16x8xf32>
    %7 = vector.extract_strided_slice %3 {offsets = [0, 1, 0], sizes = [2, 15, 8], strides = [1, 1, 1]} : vector<2x16x8xf32> to vector<2x15x8xf32>
    %8 = tpu.concatenate %7, %4 in 1 : vector<2x15x8xf32>, vector<2x1x8xf32> -> vector<2x16x8xf32>
    %9 = tpu.concatenate %6, %3, %8 in 2 : vector<2x16x8xf32>, vector<2x16x8xf32>, vector<2x16x8xf32> -> vector<2x16x24xf32>
    %10 = vector.shape_cast %9 : vector<2x16x24xf32> to vector<32x24xf32>
    %c0_5 = arith.constant 0 : index
    %c0_6 = arith.constant 0 : index
    %11 = vector.load %arg3[%c0_5, %c0_6] : memref<24x32xf32, #tpu.memory_space<vmem>>, vector<24x32xf32>
    %cst_7 = arith.constant dense<0.000000e+00> : vector<32x32xf32>
    %12 = tpu.matmul %10, %11, %cst_7 {dimension_numbers = #tpu.dot_dimension_numbers<[1], [0], [0], [1], [0, 0, 1, 1], [], []>} : vector<32x24xf32>, vector<24x32xf32>, vector<32x32xf32> -> vector<32x32xf32>
    %c0_8 = arith.constant 0 : index
    %c0_9 = arith.constant 0 : index
    %13 = vector.load %arg5[%c0_8, %c0_9] : memref<1x32xf32, #tpu.memory_space<vmem>>, vector<1x32xf32>
    %14 = vector.broadcast %13 : vector<1x32xf32> to vector<32x32xf32>
    %15 = arith.addf %12, %14 : vector<32x32xf32>
    %cst_10 = arith.constant 0.000000e+00 : f32
    %16 = vector.broadcast %cst_10 : f32 to vector<32x32xf32>
    %17 = arith.maximumf %15, %16 : vector<32x32xf32>
    %18 = vector.shape_cast %17 : vector<32x32xf32> to vector<2x16x32xf32>
    %19 = vector.broadcast %0 : vector<2x16x1xf32> to vector<2x16x32xf32>
    %20 = arith.mulf %18, %19 : vector<2x16x32xf32>
    %cst_11 = arith.constant 0.000000e+00 : f32
    %21 = vector.broadcast %cst_11 : f32 to vector<2x1x32xf32>
    %22 = vector.extract_strided_slice %20 {offsets = [0, 0, 0], sizes = [2, 15, 32], strides = [1, 1, 1]} : vector<2x16x32xf32> to vector<2x15x32xf32>
    %23 = tpu.concatenate %21, %22 in 1 : vector<2x1x32xf32>, vector<2x15x32xf32> -> vector<2x16x32xf32>
    %24 = vector.extract_strided_slice %20 {offsets = [0, 1, 0], sizes = [2, 15, 32], strides = [1, 1, 1]} : vector<2x16x32xf32> to vector<2x15x32xf32>
    %25 = tpu.concatenate %24, %21 in 1 : vector<2x15x32xf32>, vector<2x1x32xf32> -> vector<2x16x32xf32>
    %26 = tpu.concatenate %23, %20, %25 in 2 : vector<2x16x32xf32>, vector<2x16x32xf32>, vector<2x16x32xf32> -> vector<2x16x96xf32>
    %27 = vector.shape_cast %26 : vector<2x16x96xf32> to vector<32x96xf32>
    %c0_12 = arith.constant 0 : index
    %c0_13 = arith.constant 0 : index
    %28 = vector.load %arg4[%c0_12, %c0_13] : memref<96x32xf32, #tpu.memory_space<vmem>>, vector<96x32xf32>
    %cst_14 = arith.constant dense<0.000000e+00> : vector<32x32xf32>
    %29 = tpu.matmul %27, %28, %cst_14 {dimension_numbers = #tpu.dot_dimension_numbers<[1], [0], [0], [1], [0, 0, 1, 1], [], []>} : vector<32x96xf32>, vector<96x32xf32>, vector<32x32xf32> -> vector<32x32xf32>
    %c0_15 = arith.constant 0 : index
    %c0_16 = arith.constant 0 : index
    %30 = vector.load %arg6[%c0_15, %c0_16] : memref<1x32xf32, #tpu.memory_space<vmem>>, vector<1x32xf32>
    %31 = vector.broadcast %30 : vector<1x32xf32> to vector<32x32xf32>
    %32 = arith.addf %29, %31 : vector<32x32xf32>
    %cst_17 = arith.constant 0.000000e+00 : f32
    %33 = vector.broadcast %cst_17 : f32 to vector<32x32xf32>
    %34 = arith.maximumf %32, %33 : vector<32x32xf32>
    %35 = vector.shape_cast %34 : vector<32x32xf32> to vector<2x16x32xf32>
    %36 = vector.broadcast %0 : vector<2x16x1xf32> to vector<2x16x32xf32>
    %37 = arith.mulf %35, %36 : vector<2x16x32xf32>
    %c0_18 = arith.constant 0 : index
    %c0_19 = arith.constant 0 : index
    %c0_20 = arith.constant 0 : index
    %38 = vector.load %arg7[%c0_18, %c0_19, %c0_20] : memref<2x16x32xf32, #tpu.memory_space<vmem>>, vector<2x16x32xf32>
    tpu.vector_store %arg7[%c0_18, %c0_19, %c0_20], %37 {strides = array<i32>} : memref<2x16x32xf32, #tpu.memory_space<vmem>>, vector<2x16x32xf32>,
    return
  }
  func.func @transform_0(%arg0: i32) -> (i32, i32, i32) {
    %c0_i32 = arith.constant 0 : i32
    %c0_i32_0 = arith.constant 0 : i32
    %c0_i32_1 = arith.constant 0 : i32
    return %arg0, %c0_i32, %c0_i32_0 : i32, i32, i32
  }
  func.func @transform_1(%arg0: i32) -> (i32, i32, i32) {
    %c0_i32 = arith.constant 0 : i32
    %c0_i32_0 = arith.constant 0 : i32
    %c0_i32_1 = arith.constant 0 : i32
    return %arg0, %c0_i32, %c0_i32_0 : i32, i32, i32
  }
  func.func @transform_2(%arg0: i32) -> (i32, i32) {
    %c0_i32 = arith.constant 0 : i32
    %c0_i32_0 = arith.constant 0 : i32
    %c0_i32_1 = arith.constant 0 : i32
    return %c0_i32, %c0_i32_0 : i32, i32
  }
  func.func @transform_3(%arg0: i32) -> (i32, i32) {
    %c0_i32 = arith.constant 0 : i32
    %c0_i32_0 = arith.constant 0 : i32
    %c0_i32_1 = arith.constant 0 : i32
    return %c0_i32, %c0_i32_0 : i32, i32
  }
  func.func @transform_4(%arg0: i32) -> (i32, i32) {
    %c0_i32 = arith.constant 0 : i32
    %c0_i32_0 = arith.constant 0 : i32
    %c0_i32_1 = arith.constant 0 : i32
    return %c0_i32, %c0_i32_0 : i32, i32
  }
  func.func @transform_5(%arg0: i32) -> (i32, i32) {
    %c0_i32 = arith.constant 0 : i32
    %c0_i32_0 = arith.constant 0 : i32
    %c0_i32_1 = arith.constant 0 : i32
    return %c0_i32, %c0_i32_0 : i32, i32
  }
  func.func @transform_6(%arg0: i32) -> (i32, i32, i32) {
    %c0_i32 = arith.constant 0 : i32
    %c0_i32_0 = arith.constant 0 : i32
    %c0_i32_1 = arith.constant 0 : i32
    return %arg0, %c0_i32, %c0_i32_0 : i32, i32, i32
  }
}

module attributes {stable_mosaic.version = 11 : i64} {
  func.func @kernel(%arg0: memref<16x2x32xf32, #tpu.memory_space<vmem>>, %arg1: memref<16x2x1xf32, #tpu.memory_space<vmem>>, %arg2: memref<32x64xf32, #tpu.memory_space<vmem>>, %arg3: memref<16x64xf32, #tpu.memory_space<vmem>>, %arg4: memref<1x64xf32, #tpu.memory_space<vmem>>, %arg5: memref<32x64xf32, #tpu.memory_space<vmem>>, %arg6: memref<16x64xf32, #tpu.memory_space<vmem>>, %arg7: memref<1x64xf32, #tpu.memory_space<vmem>>, %arg8: memref<16x2x16xf32, #tpu.memory_space<vmem>>, %arg9: memref<16x2x16xf32, #tpu.memory_space<vmem>>, %arg10: memref<16x2x64xf32, #tpu.memory_space<vmem>>, %arg11: memref<16x2x64xf32, #tpu.memory_space<vmem>>, %arg12: memref<16x2x16xf32, #tpu.memory_space<vmem>>, %arg13: memref<16x2x16xf32, #tpu.memory_space<vmem>>) attributes {dimension_semantics = [], scalar_prefetch = 0 : i64, scratch_operands = 4 : i64, tpu.core_type = #tpu.core_type<tc>} {
    %c0 = arith.constant 0 : index
    %c0_0 = arith.constant 0 : index
    %0 = vector.load %arg3[%c0, %c0_0] : memref<16x64xf32, #tpu.memory_space<vmem>>, vector<16x64xf32>
    %c0_1 = arith.constant 0 : index
    %c0_2 = arith.constant 0 : index
    %1 = vector.load %arg6[%c0_1, %c0_2] : memref<16x64xf32, #tpu.memory_space<vmem>>, vector<16x64xf32>
    %cst = arith.constant 0.000000e+00 : f32
    %2 = vector.broadcast %cst : f32 to vector<2x16xf32>
    %cst_3 = arith.constant 0.000000e+00 : f32
    %3 = vector.broadcast %cst_3 : f32 to vector<2x16xf32>
    %c0_i32 = arith.constant 0 : i32
    %c16_i32 = arith.constant 16 : i32
    %4 = arith.muli %c0_i32, %c16_i32 : i32
    %c1_i32 = arith.constant 1 : i32
    %5 = arith.addi %c0_i32, %c1_i32 : i32
    %c16_i32_4 = arith.constant 16 : i32
    %6 = arith.muli %5, %c16_i32_4 : i32
    %c16_i32_5 = arith.constant 16 : i32
    %7 = arith.subi %c16_i32_5, %6 : i32
    %8 = arith.index_cast %4 : i32 to index
    %c0_6 = arith.constant 0 : index
    %c0_7 = arith.constant 0 : index
    %9 = vector.load %arg0[%8, %c0_6, %c0_7] : memref<16x2x32xf32, #tpu.memory_space<vmem>>, vector<16x2x32xf32>
    %10 = vector.shape_cast %9 : vector<16x2x32xf32> to vector<32x32xf32>
    %11 = arith.index_cast %7 : i32 to index
    %c0_8 = arith.constant 0 : index
    %c0_9 = arith.constant 0 : index
    %12 = vector.load %arg0[%11, %c0_8, %c0_9] : memref<16x2x32xf32, #tpu.memory_space<vmem>>, vector<16x2x32xf32>
    %13 = vector.shape_cast %12 : vector<16x2x32xf32> to vector<32x32xf32>
    %c0_10 = arith.constant 0 : index
    %c0_11 = arith.constant 0 : index
    %14 = vector.load %arg2[%c0_10, %c0_11] : memref<32x64xf32, #tpu.memory_space<vmem>>, vector<32x64xf32>
    %cst_12 = arith.constant dense<0.000000e+00> : vector<32x64xf32>
    %15 = tpu.matmul %10, %14, %cst_12 {dimension_numbers = #tpu.dot_dimension_numbers<[1], [0], [0], [1], [0, 0, 1, 1], [], []>} : vector<32x32xf32>, vector<32x64xf32>, vector<32x64xf32> -> vector<32x64xf32>
    %c0_13 = arith.constant 0 : index
    %c0_14 = arith.constant 0 : index
    %16 = vector.load %arg4[%c0_13, %c0_14] : memref<1x64xf32, #tpu.memory_space<vmem>>, vector<1x64xf32>
    %17 = vector.broadcast %16 : vector<1x64xf32> to vector<32x64xf32>
    %18 = arith.addf %15, %17 : vector<32x64xf32>
    %19 = vector.shape_cast %18 : vector<32x64xf32> to vector<16x2x64xf32>
    %c0_15 = arith.constant 0 : index
    %c0_16 = arith.constant 0 : index
    %c0_17 = arith.constant 0 : index
    %20 = vector.load %arg10[%c0_15, %c0_16, %c0_17] : memref<16x2x64xf32, #tpu.memory_space<vmem>>, vector<16x2x64xf32>
    tpu.vector_store %arg10[%c0_15, %c0_16, %c0_17], %19 {strides = array<i32>} : memref<16x2x64xf32, #tpu.memory_space<vmem>>, vector<16x2x64xf32>,
    %c0_18 = arith.constant 0 : index
    %c0_19 = arith.constant 0 : index
    %21 = vector.load %arg5[%c0_18, %c0_19] : memref<32x64xf32, #tpu.memory_space<vmem>>, vector<32x64xf32>
    %cst_20 = arith.constant dense<0.000000e+00> : vector<32x64xf32>
    %22 = tpu.matmul %13, %21, %cst_20 {dimension_numbers = #tpu.dot_dimension_numbers<[1], [0], [0], [1], [0, 0, 1, 1], [], []>} : vector<32x32xf32>, vector<32x64xf32>, vector<32x64xf32> -> vector<32x64xf32>
    %c0_21 = arith.constant 0 : index
    %c0_22 = arith.constant 0 : index
    %23 = vector.load %arg7[%c0_21, %c0_22] : memref<1x64xf32, #tpu.memory_space<vmem>>, vector<1x64xf32>
    %24 = vector.broadcast %23 : vector<1x64xf32> to vector<32x64xf32>
    %25 = arith.addf %22, %24 : vector<32x64xf32>
    %26 = vector.shape_cast %25 : vector<32x64xf32> to vector<16x2x64xf32>
    %c0_23 = arith.constant 0 : index
    %c0_24 = arith.constant 0 : index
    %c0_25 = arith.constant 0 : index
    %27 = vector.load %arg11[%c0_23, %c0_24, %c0_25] : memref<16x2x64xf32, #tpu.memory_space<vmem>>, vector<16x2x64xf32>
    tpu.vector_store %arg11[%c0_23, %c0_24, %c0_25], %26 {strides = array<i32>} : memref<16x2x64xf32, #tpu.memory_space<vmem>>, vector<16x2x64xf32>,
    %c0_i32_26 = arith.constant 0 : i32
    %c16_i32_27 = arith.constant 16 : i32
    %28 = arith.addi %c0_i32_26, %c16_i32_27 : i32
    %c1_i32_28 = arith.constant 1 : i32
    %29:4 = scf.for %arg14 = %c0_i32_26 to %28 step %c1_i32_28 iter_args(%arg15 = %2, %arg16 = %3, %arg17 = %2, %arg18 = %3) -> (vector<2x16xf32>, vector<2x16xf32>, vector<2x16xf32>, vector<2x16xf32>)  : i32 {
      %36 = arith.addi %4, %arg14 : i32
      %37 = arith.index_cast %36 : i32 to index
      %c0_41 = arith.constant 0 : index
      %c0_42 = arith.constant 0 : index
      %38 = vector.load %arg1[%37, %c0_41, %c0_42] : memref<16x2x1xf32, #tpu.memory_space<vmem>>, vector<1x2x1xf32>
      %39 = vector.shape_cast %38 : vector<1x2x1xf32> to vector<2x1xf32>
      %40 = arith.index_cast %arg14 : i32 to index
      %c0_43 = arith.constant 0 : index
      %c0_44 = arith.constant 0 : index
      %41 = vector.load %arg10[%40, %c0_43, %c0_44] : memref<16x2x64xf32, #tpu.memory_space<vmem>>, vector<1x2x64xf32>
      %42 = vector.shape_cast %41 : vector<1x2x64xf32> to vector<2x64xf32>
      %cst_45 = arith.constant dense<0.000000e+00> : vector<2x64xf32>
      %43 = tpu.matmul %arg15, %0, %cst_45 {dimension_numbers = #tpu.dot_dimension_numbers<[1], [0], [0], [1], [0, 0, 1, 1], [], []>} : vector<2x16xf32>, vector<16x64xf32>, vector<2x64xf32> -> vector<2x64xf32>
      %44 = arith.addf %42, %43 : vector<2x64xf32>
      %45 = vector.extract_strided_slice %44 {offsets = [0, 0], sizes = [2, 16], strides = [1, 1]} : vector<2x64xf32> to vector<2x16xf32>
      %46 = arith.negf %45 : vector<2x16xf32>
      %47 = math.exp %46 : vector<2x16xf32>
      %cst_46 = arith.constant 1.000000e+00 : f32
      %48 = vector.broadcast %cst_46 : f32 to vector<2x16xf32>
      %49 = arith.addf %48, %47 : vector<2x16xf32>
      %50 = arith.divf %48, %49 : vector<2x16xf32>
      %51 = vector.extract_strided_slice %44 {offsets = [0, 16], sizes = [2, 16], strides = [1, 1]} : vector<2x64xf32> to vector<2x16xf32>
      %52 = arith.negf %51 : vector<2x16xf32>
      %53 = math.exp %52 : vector<2x16xf32>
      %cst_47 = arith.constant 1.000000e+00 : f32
      %54 = vector.broadcast %cst_47 : f32 to vector<2x16xf32>
      %55 = arith.addf %54, %53 : vector<2x16xf32>
      %56 = arith.divf %54, %55 : vector<2x16xf32>
      %57 = vector.extract_strided_slice %44 {offsets = [0, 32], sizes = [2, 16], strides = [1, 1]} : vector<2x64xf32> to vector<2x16xf32>
      %58 = math.tanh %57 : vector<2x16xf32>
      %59 = vector.extract_strided_slice %44 {offsets = [0, 48], sizes = [2, 16], strides = [1, 1]} : vector<2x64xf32> to vector<2x16xf32>
      %60 = arith.negf %59 : vector<2x16xf32>
      %61 = math.exp %60 : vector<2x16xf32>
      %cst_48 = arith.constant 1.000000e+00 : f32
      %62 = vector.broadcast %cst_48 : f32 to vector<2x16xf32>
      %63 = arith.addf %62, %61 : vector<2x16xf32>
      %64 = arith.divf %62, %63 : vector<2x16xf32>
      %65 = arith.mulf %56, %arg16 : vector<2x16xf32>
      %66 = arith.mulf %50, %58 : vector<2x16xf32>
      %67 = arith.addf %65, %66 : vector<2x16xf32>
      %68 = math.tanh %67 : vector<2x16xf32>
      %69 = arith.mulf %64, %68 : vector<2x16xf32>
      %70 = vector.broadcast %39 : vector<2x1xf32> to vector<2x16xf32>
      %71 = arith.mulf %70, %69 : vector<2x16xf32>
      %cst_49 = arith.constant 1.000000e+00 : f32
      %72 = vector.broadcast %cst_49 : f32 to vector<2x1xf32>
      %73 = arith.subf %72, %39 : vector<2x1xf32>
      %74 = vector.broadcast %73 : vector<2x1xf32> to vector<2x16xf32>
      %75 = arith.mulf %74, %arg15 : vector<2x16xf32>
      %76 = arith.addf %71, %75 : vector<2x16xf32>
      %77 = vector.broadcast %39 : vector<2x1xf32> to vector<2x16xf32>
      %78 = arith.mulf %77, %67 : vector<2x16xf32>
      %cst_50 = arith.constant 1.000000e+00 : f32
      %79 = vector.broadcast %cst_50 : f32 to vector<2x1xf32>
      %80 = arith.subf %79, %39 : vector<2x1xf32>
      %81 = vector.broadcast %80 : vector<2x1xf32> to vector<2x16xf32>
      %82 = arith.mulf %81, %arg16 : vector<2x16xf32>
      %83 = arith.addf %78, %82 : vector<2x16xf32>
      %84 = vector.broadcast %39 : vector<2x1xf32> to vector<2x16xf32>
      %85 = arith.mulf %76, %84 : vector<2x16xf32>
      %86 = arith.index_cast %arg14 : i32 to index
      %c0_51 = arith.constant 0 : index
      %c0_52 = arith.constant 0 : index
      %87 = vector.load %arg12[%86, %c0_51, %c0_52] : memref<16x2x16xf32, #tpu.memory_space<vmem>>, vector<1x2x16xf32>
      %88 = vector.shape_cast %87 : vector<1x2x16xf32> to vector<2x16xf32>
      %89 = vector.shape_cast %85 : vector<2x16xf32> to vector<1x2x16xf32>
      tpu.vector_store %arg12[%86, %c0_51, %c0_52], %89 {strides = array<i32>} : memref<16x2x16xf32, #tpu.memory_space<vmem>>, vector<1x2x16xf32>,
      %c15_i32 = arith.constant 15 : i32
      %90 = arith.subi %c15_i32, %arg14 : i32
      %91 = arith.addi %7, %90 : i32
      %92 = arith.index_cast %91 : i32 to index
      %c0_53 = arith.constant 0 : index
      %c0_54 = arith.constant 0 : index
      %93 = vector.load %arg1[%92, %c0_53, %c0_54] : memref<16x2x1xf32, #tpu.memory_space<vmem>>, vector<1x2x1xf32>
      %94 = vector.shape_cast %93 : vector<1x2x1xf32> to vector<2x1xf32>
      %95 = arith.index_cast %90 : i32 to index
      %c0_55 = arith.constant 0 : index
      %c0_56 = arith.constant 0 : index
      %96 = vector.load %arg11[%95, %c0_55, %c0_56] : memref<16x2x64xf32, #tpu.memory_space<vmem>>, vector<1x2x64xf32>
      %97 = vector.shape_cast %96 : vector<1x2x64xf32> to vector<2x64xf32>
      %cst_57 = arith.constant dense<0.000000e+00> : vector<2x64xf32>
      %98 = tpu.matmul %arg17, %1, %cst_57 {dimension_numbers = #tpu.dot_dimension_numbers<[1], [0], [0], [1], [0, 0, 1, 1], [], []>} : vector<2x16xf32>, vector<16x64xf32>, vector<2x64xf32> -> vector<2x64xf32>
      %99 = arith.addf %97, %98 : vector<2x64xf32>
      %100 = vector.extract_strided_slice %99 {offsets = [0, 0], sizes = [2, 16], strides = [1, 1]} : vector<2x64xf32> to vector<2x16xf32>
      %101 = arith.negf %100 : vector<2x16xf32>
      %102 = math.exp %101 : vector<2x16xf32>
      %cst_58 = arith.constant 1.000000e+00 : f32
      %103 = vector.broadcast %cst_58 : f32 to vector<2x16xf32>
      %104 = arith.addf %103, %102 : vector<2x16xf32>
      %105 = arith.divf %103, %104 : vector<2x16xf32>
      %106 = vector.extract_strided_slice %99 {offsets = [0, 16], sizes = [2, 16], strides = [1, 1]} : vector<2x64xf32> to vector<2x16xf32>
      %107 = arith.negf %106 : vector<2x16xf32>
      %108 = math.exp %107 : vector<2x16xf32>
      %cst_59 = arith.constant 1.000000e+00 : f32
      %109 = vector.broadcast %cst_59 : f32 to vector<2x16xf32>
      %110 = arith.addf %109, %108 : vector<2x16xf32>
      %111 = arith.divf %109, %110 : vector<2x16xf32>
      %112 = vector.extract_strided_slice %99 {offsets = [0, 32], sizes = [2, 16], strides = [1, 1]} : vector<2x64xf32> to vector<2x16xf32>
      %113 = math.tanh %112 : vector<2x16xf32>
      %114 = vector.extract_strided_slice %99 {offsets = [0, 48], sizes = [2, 16], strides = [1, 1]} : vector<2x64xf32> to vector<2x16xf32>
      %115 = arith.negf %114 : vector<2x16xf32>
      %116 = math.exp %115 : vector<2x16xf32>
      %cst_60 = arith.constant 1.000000e+00 : f32
      %117 = vector.broadcast %cst_60 : f32 to vector<2x16xf32>
      %118 = arith.addf %117, %116 : vector<2x16xf32>
      %119 = arith.divf %117, %118 : vector<2x16xf32>
      %120 = arith.mulf %111, %arg18 : vector<2x16xf32>
      %121 = arith.mulf %105, %113 : vector<2x16xf32>
      %122 = arith.addf %120, %121 : vector<2x16xf32>
      %123 = math.tanh %122 : vector<2x16xf32>
      %124 = arith.mulf %119, %123 : vector<2x16xf32>
      %125 = vector.broadcast %94 : vector<2x1xf32> to vector<2x16xf32>
      %126 = arith.mulf %125, %124 : vector<2x16xf32>
      %cst_61 = arith.constant 1.000000e+00 : f32
      %127 = vector.broadcast %cst_61 : f32 to vector<2x1xf32>
      %128 = arith.subf %127, %94 : vector<2x1xf32>
      %129 = vector.broadcast %128 : vector<2x1xf32> to vector<2x16xf32>
      %130 = arith.mulf %129, %arg17 : vector<2x16xf32>
      %131 = arith.addf %126, %130 : vector<2x16xf32>
      %132 = vector.broadcast %94 : vector<2x1xf32> to vector<2x16xf32>
      %133 = arith.mulf %132, %122 : vector<2x16xf32>
      %cst_62 = arith.constant 1.000000e+00 : f32
      %134 = vector.broadcast %cst_62 : f32 to vector<2x1xf32>
      %135 = arith.subf %134, %94 : vector<2x1xf32>
      %136 = vector.broadcast %135 : vector<2x1xf32> to vector<2x16xf32>
      %137 = arith.mulf %136, %arg18 : vector<2x16xf32>
      %138 = arith.addf %133, %137 : vector<2x16xf32>
      %139 = vector.broadcast %94 : vector<2x1xf32> to vector<2x16xf32>
      %140 = arith.mulf %131, %139 : vector<2x16xf32>
      %141 = arith.index_cast %90 : i32 to index
      %c0_63 = arith.constant 0 : index
      %c0_64 = arith.constant 0 : index
      %142 = vector.load %arg13[%141, %c0_63, %c0_64] : memref<16x2x16xf32, #tpu.memory_space<vmem>>, vector<1x2x16xf32>
      %143 = vector.shape_cast %142 : vector<1x2x16xf32> to vector<2x16xf32>
      %144 = vector.shape_cast %140 : vector<2x16xf32> to vector<1x2x16xf32>
      tpu.vector_store %arg13[%141, %c0_63, %c0_64], %144 {strides = array<i32>} : memref<16x2x16xf32, #tpu.memory_space<vmem>>, vector<1x2x16xf32>,
      scf.yield %76, %83, %131, %138 : vector<2x16xf32>, vector<2x16xf32>, vector<2x16xf32>, vector<2x16xf32>
    }
    %c16_i32_29 = arith.constant 16 : i32
    %c0_30 = arith.constant 0 : index
    %c0_31 = arith.constant 0 : index
    %c0_32 = arith.constant 0 : index
    %30 = vector.load %arg12[%c0_30, %c0_31, %c0_32] : memref<16x2x16xf32, #tpu.memory_space<vmem>>, vector<16x2x16xf32>
    %31 = arith.index_cast %4 : i32 to index
    %c0_33 = arith.constant 0 : index
    %c0_34 = arith.constant 0 : index
    %32 = vector.load %arg8[%31, %c0_33, %c0_34] : memref<16x2x16xf32, #tpu.memory_space<vmem>>, vector<16x2x16xf32>
    tpu.vector_store %arg8[%31, %c0_33, %c0_34], %30 {strides = array<i32>} : memref<16x2x16xf32, #tpu.memory_space<vmem>>, vector<16x2x16xf32>,
    %c0_35 = arith.constant 0 : index
    %c0_36 = arith.constant 0 : index
    %c0_37 = arith.constant 0 : index
    %33 = vector.load %arg13[%c0_35, %c0_36, %c0_37] : memref<16x2x16xf32, #tpu.memory_space<vmem>>, vector<16x2x16xf32>
    %34 = arith.index_cast %7 : i32 to index
    %c0_38 = arith.constant 0 : index
    %c0_39 = arith.constant 0 : index
    %35 = vector.load %arg9[%34, %c0_38, %c0_39] : memref<16x2x16xf32, #tpu.memory_space<vmem>>, vector<16x2x16xf32>
    tpu.vector_store %arg9[%34, %c0_38, %c0_39], %33 {strides = array<i32>} : memref<16x2x16xf32, #tpu.memory_space<vmem>>, vector<16x2x16xf32>,
    %c1_i32_40 = arith.constant 1 : i32
    return
  }
}

</mosaic_0001>

<llo_original>
// kernel: conv_lstm_linear_forward.5
$region0: #{conv_lstm_linear_forward.5}
  #allocation0 [shape = 'u32[]', space=smem, size = 0x4, offset = 0x4, fixed_abs, tag = 'smem constant byte address 0x4 - core index']
  #allocation1 [shape = 'u32[144,128]{1,0:T(1,128)}', space=vmem, size = 0x12000, scoped, tag = 'internal scratch']
  %s0 = inlined_call_operand.vmem [shape: f32[16,2,16], index: 0, kind: input, shape index: {}]
  %s1 = inlined_call_operand.hbm [shape: f32[16,2,16], index: 1, kind: input, shape index: {}]
  %s2 = inlined_call_operand.vmem [shape: f32[32,8], index: 2, kind: input, shape index: {}]
  %s3 = inlined_call_operand.vmem [shape: f32[1,8], index: 3, kind: input, shape index: {}]
  %s4 = inlined_call_operand.vmem [shape: f32[16,2,8], index: 4, kind: output, shape index: {}]
  %s5 = sld [smem:[#allocation0]]
  $region30: #{conv_lstm_linear_forward.5} parent=0
    _
  %s7 = ssub.s32 1, %s5
  %s8 = scalar_select 0, %s7, %s5
  $region1: #{conv_lstm_linear_forward.5} parent=0
    #allocation2 [shape = 'u8[16384]{0}', space=vmem, size = 0x4000, scoped, tag = 'input window, operand 1, single buffered']
    #allocation3 [shape = 's32[1]{0}', space=sflag, size = 0x4, scoped, tag = 'scoped memory for conv_lstm_linear_forward.5']
    %9 = vsyncpa [#allocation3], 0
    // Predicated region
    $region2: #{conv_lstm_linear_forward.5} parent=1 // pred_check
      _
    $region3: #{conv_lstm_linear_forward.5} parent=1 // pred_check_branch
      %11 = sbr.rel (0) target = $region5
    $region4: #{conv_lstm_linear_forward.5} parent=1 // pred_region
      _
    $region5: #{conv_lstm_linear_forward.5} parent=1 // pred_fallthru
      _
    // Predicated region
    $region6: #{conv_lstm_linear_forward.5} parent=1 // pred_check
      _
    $region7: #{conv_lstm_linear_forward.5} parent=1 // pred_check_branch
      %13 = sbr.rel (0) target = $region9
    $region8: #{conv_lstm_linear_forward.5} parent=1 // pred_region
      %s15 = ssub.s32 512, 512
      %16 = vsyncadd [#allocation3], %s15
      %s17 = sshll.u32 [#allocation2], 4
      %s18 = int_to_ptr.vmem [resolvable:$true] %s17
      %23 = dma.hbm_to_vmem [thread:$0]  %s1, 512, %s18, [#allocation3], 32, 32, 2
    $region9: #{conv_lstm_linear_forward.5} parent=1 // pred_fallthru
      _
    // Predicated region
    $region10: #{conv_lstm_linear_forward.5} parent=1 // pred_check
      _
    $region11: #{conv_lstm_linear_forward.5} parent=1 // pred_check_branch
      %25 = sbr.rel (0) target = $region13
    $region12: #{conv_lstm_linear_forward.5} parent=1 // pred_region
      _
    $region13: #{conv_lstm_linear_forward.5} parent=1 // pred_fallthru
      _
    // Predicated region
    $region14: #{conv_lstm_linear_forward.5} parent=1 // pred_check
      _
    $region15: #{conv_lstm_linear_forward.5} parent=1 // pred_check_branch
      %27 = sbr.rel (0) target = $region17
    $region16: #{conv_lstm_linear_forward.5} parent=1 // pred_region
      _
    $region17: #{conv_lstm_linear_forward.5} parent=1 // pred_fallthru
      _
    // Predicated region
    $region18: #{conv_lstm_linear_forward.5} parent=1 // pred_check
      _
    $region19: #{conv_lstm_linear_forward.5} parent=1 // pred_check_branch
      %29 = sbr.rel (0) target = $region21
    $region20: #{conv_lstm_linear_forward.5} parent=1 // pred_region
      %30 = dma.done [#allocation3], 512
    $region21: #{conv_lstm_linear_forward.5} parent=1 // pred_fallthru
      _
    %v31 = vld [vmem:[%s0] sm:$0x3]
    %v32 = vld [vmem:[%s0 + $0x2] sm:$0x3]
    %v33 = vld [vmem:[%s0 + $0x4] sm:$0x3]
    %v34 = vld [vmem:[%s0 + $0x6] sm:$0x3]
    %v35 = vld [vmem:[%s0 + $0x8] sm:$0x3]
    %v36 = vld [vmem:[%s0 + $0xa] sm:$0x3]
    %v37 = vld [vmem:[%s0 + $0xc] sm:$0x3]
    %v38 = vld [vmem:[%s0 + $0xe] sm:$0x3]
    %v39 = vld [vmem:[%s0 + $0x10] sm:$0x3]
    %v40 = vld [vmem:[%s0 + $0x12] sm:$0x3]
    %v41 = vld [vmem:[%s0 + $0x14] sm:$0x3]
    %v42 = vld [vmem:[%s0 + $0x16] sm:$0x3]
    %v43 = vld [vmem:[%s0 + $0x18] sm:$0x3]
    %v44 = vld [vmem:[%s0 + $0x1a] sm:$0x3]
    %v45 = vld [vmem:[%s0 + $0x1c] sm:$0x3]
    %v46 = vld [vmem:[%s0 + $0x1e] sm:$0x3]
    %v47 = vld [vmem:[#allocation2] sm:$0x3]
    %v48 = vld [vmem:[#allocation2 + $0x2] sm:$0x3]
    %v49 = vld [vmem:[#allocation2 + $0x4] sm:$0x3]
    %v50 = vld [vmem:[#allocation2 + $0x6] sm:$0x3]
    %v51 = vld [vmem:[#allocation2 + $0x8] sm:$0x3]
    %v52 = vld [vmem:[#allocation2 + $0xa] sm:$0x3]
    %v53 = vld [vmem:[#allocation2 + $0xc] sm:$0x3]
    %v54 = vld [vmem:[#allocation2 + $0xe] sm:$0x3]
    %v55 = vld [vmem:[#allocation2 + $0x10] sm:$0x3]
    %v56 = vld [vmem:[#allocation2 + $0x12] sm:$0x3]
    %v57 = vld [vmem:[#allocation2 + $0x14] sm:$0x3]
    %v58 = vld [vmem:[#allocation2 + $0x16] sm:$0x3]
    %v59 = vld [vmem:[#allocation2 + $0x18] sm:$0x3]
    %v60 = vld [vmem:[#allocation2 + $0x1a] sm:$0x3]
    %v61 = vld [vmem:[#allocation2 + $0x1c] sm:$0x3]
    %v62 = vld [vmem:[#allocation2 + $0x1e] sm:$0x3]
    %79 = vrot.lane.b32.xlu0 %v47, 16
    %v80 = vpop.permute.xlu0 %79
    %81 = vrot.lane.b32.xlu0 %v48, 16
    %v82 = vpop.permute.xlu0 %81
    %83 = vrot.lane.b32.xlu0 %v49, 16
    %v84 = vpop.permute.xlu0 %83
    %85 = vrot.lane.b32.xlu0 %v50, 16
    %v86 = vpop.permute.xlu0 %85
    %87 = vrot.lane.b32.xlu0 %v51, 16
    %v88 = vpop.permute.xlu0 %87
    %89 = vrot.lane.b32.xlu0 %v52, 16
    %v90 = vpop.permute.xlu0 %89
    %91 = vrot.lane.b32.xlu0 %v53, 16
    %v92 = vpop.permute.xlu0 %91
    %93 = vrot.lane.b32.xlu0 %v54, 16
    %v94 = vpop.permute.xlu0 %93
    %95 = vrot.lane.b32.xlu0 %v55, 16
    %v96 = vpop.permute.xlu0 %95
    %97 = vrot.lane.b32.xlu0 %v56, 16
    %v98 = vpop.permute.xlu0 %97
    %99 = vrot.lane.b32.xlu0 %v57, 16
    %v100 = vpop.permute.xlu0 %99
    %101 = vrot.lane.b32.xlu0 %v58, 16
    %v102 = vpop.permute.xlu0 %101
    %103 = vrot.lane.b32.xlu0 %v59, 16
    %v104 = vpop.permute.xlu0 %103
    %105 = vrot.lane.b32.xlu0 %v60, 16
    %v106 = vpop.permute.xlu0 %105
    %107 = vrot.lane.b32.xlu0 %v61, 16
    %v108 = vpop.permute.xlu0 %107
    %109 = vrot.lane.b32.xlu0 %v62, 16
    %v110 = vpop.permute.xlu0 %109
    %vm127 = vcmask 130048
    %v128 = vsel %vm127, %v31, %v80
    %v129 = vsel %vm127, %v32, %v82
    %v130 = vsel %vm127, %v33, %v84
    %v131 = vsel %vm127, %v34, %v86
    %v132 = vsel %vm127, %v35, %v88
    %v133 = vsel %vm127, %v36, %v90
    %v134 = vsel %vm127, %v37, %v92
    %v135 = vsel %vm127, %v38, %v94
    %v136 = vsel %vm127, %v39, %v96
    %v137 = vsel %vm127, %v40, %v98
    %v138 = vsel %vm127, %v41, %v100
    %v139 = vsel %vm127, %v42, %v102
    %v140 = vsel %vm127, %v43, %v104
    %v141 = vsel %vm127, %v44, %v106
    %v142 = vsel %vm127, %v45, %v108
    %v143 = vsel %vm127, %v46, %v110
    %v144 = vld [vmem:[%s2] sm:$0xff]
    %v145 = vld [vmem:[%s2 + $0x8] sm:$0xff]
    %v146 = vld [vmem:[%s2 + $0x10] sm:$0xff]
    %v147 = vld [vmem:[%s2 + $0x18] sm:$0xff]
    %v148 = vld [vmem:[%s3] sm:$0x1]
    %v150 = vlaneseq
    %v151 = vshrl.u32 %v150, 7
    %v152 = vsub.s32 0, %v151
    %v153 = vrot.slane %v148, %v152
    %v171 = vcombine.low %v128, %v129
    %v172 = vcombine.low %v130, %v131
    %v174 = vunpack.c.l.s4 1983009808
    %v175 = vunpack.c.0.s8 %v174
    %v176 = vlaneseq
    %v177 = vshrl.u32 %v176, 7
    %v178 = vsub.s32 %v175, %v177
    %v179 = vrot.slane %v171, %v178
    %v181 = vunpack.c.l.s4 1983009808
    %v182 = vunpack.c.0.s8 %v181
    %v183 = vlaneseq
    %v184 = vshrl.u32 %v183, 7
    %v185 = vsub.s32 %v182, %v184
    %v186 = vrot.slane %v172, %v185
    %v187 = vcombine.low %v179, %v186
    %v188 = vcombine.low %v132, %v133
    %v189 = vcombine.low %v134, %v135
    %v191 = vunpack.c.l.s4 1983009808
    %v192 = vunpack.c.0.s8 %v191
    %v193 = vlaneseq
    %v194 = vshrl.u32 %v193, 7
    %v195 = vsub.s32 %v192, %v194
    %v196 = vrot.slane %v188, %v195
    %v198 = vunpack.c.l.s4 1983009808
    %v199 = vunpack.c.0.s8 %v198
    %v200 = vlaneseq
    %v201 = vshrl.u32 %v200, 7
    %v202 = vsub.s32 %v199, %v201
    %v203 = vrot.slane %v189, %v202
    %v204 = vcombine.low %v196, %v203
    %v205 = vcombine.low %v136, %v137
    %v206 = vcombine.low %v138, %v139
    %v208 = vunpack.c.l.s4 1983009808
    %v209 = vunpack.c.0.s8 %v208
    %v210 = vlaneseq
    %v211 = vshrl.u32 %v210, 7
    %v212 = vsub.s32 %v209, %v211
    %v213 = vrot.slane %v205, %v212
    %v215 = vunpack.c.l.s4 1983009808
    %v216 = vunpack.c.0.s8 %v215
    %v217 = vlaneseq
    %v218 = vshrl.u32 %v217, 7
    %v219 = vsub.s32 %v216, %v218
    %v220 = vrot.slane %v206, %v219
    %v221 = vcombine.low %v213, %v220
    %v222 = vcombine.low %v140, %v141
    %v223 = vcombine.low %v142, %v143
    %v225 = vunpack.c.l.s4 1983009808
    %v226 = vunpack.c.0.s8 %v225
    %v227 = vlaneseq
    %v228 = vshrl.u32 %v227, 7
    %v229 = vsub.s32 %v226, %v228
    %v230 = vrot.slane %v222, %v229
    %v232 = vunpack.c.l.s4 1983009808
    %v233 = vunpack.c.0.s8 %v232
    %v234 = vlaneseq
    %v235 = vshrl.u32 %v234, 7
    %v236 = vsub.s32 %v233, %v235
    %v237 = vrot.slane %v223, %v236
    %v238 = vcombine.low %v230, %v237
    %vm239 = vcmask 261120
    %v240 = vsel %vm239, %v187, 0
    %v242 = vsel %vm239, %v204, 0
    %v244 = vsel %vm239, %v221, 0
    %v246 = vsel %vm239, %v238, 0
    %248 = vmatprep.subr.mxu0 0.0
    %249 = vmatpush1.msra.mxu0 %v144
    %250 = vmatprep.subr.mxu0 0.0
    %251 = vmatpush1.msra.mxu0 %v145
    %252 = vmatprep.subr.mxu0 0.0
    %253 = vmatpush1.msra.mxu0 %v146
    %254 = vmatprep.subr.mxu0 0.0
    %255 = vmatpush1.msra.mxu0 %v147
    %256 = vmatprep.subr.mxu0 0.0
    %257 = vmatpush1.msra.mxu0 0.0
    %258 = vmatprep.subr.mxu0 0.0
    %259 = vmatpush1.msra.mxu0 0.0
    %260 = vmatprep.subr.mxu0 0.0
    %261 = vmatpush1.msra.mxu0 0.0
    %262 = vmatprep.subr.mxu0 0.0
    %263 = vmatpush1.msra.mxu0 0.0
    %264 = vmatprep.subr.mxu0 0.0
    %265 = vmatpush1.msra.mxu0 0.0
    %266 = vmatprep.subr.mxu0 0.0
    %267 = vmatpush1.msra.mxu0 0.0
    %268 = vmatprep.subr.mxu0 0.0
    %269 = vmatpush1.msra.mxu0 0.0
    %270 = vmatprep.subr.mxu0 0.0
    %271 = vmatpush1.msra.mxu0 0.0
    %272 = vmatprep.subr.mxu0 0.0
    %273 = vmatpush1.msra.mxu0 0.0
    %274 = vmatprep.subr.mxu0 0.0
    %275 = vmatpush1.msra.mxu0 0.0
    %276 = vmatprep.subr.mxu0 0.0
    %277 = vmatpush1.msra.mxu0 0.0
    %278 = vmatprep.subr.mxu0 0.0
    %279 = vmatpush1.msra.mxu0 0.0
    %280 = vmatprep.subr.mxu0 0.0
    %281 = vmatpush1.msra.mxu0 0.0
    %282 = vmatprep.subr.mxu0 0.0
    %283 = vmatpush1.msra.mxu0 0.0
    %284 = vmatprep.subr.mxu0 0.0
    %285 = vmatpush1.msra.mxu0 0.0
    %286 = vmatprep.subr.mxu0 0.0
    %287 = vmatpush1.msra.mxu0 0.0
    %288 = vmatprep.subr.mxu0 0.0
    %289 = vmatpush1.msra.mxu0 0.0
    %290 = vmatprep.subr.mxu0 0.0
    %291 = vmatpush1.msra.mxu0 0.0
    %292 = vmatprep.subr.mxu0 0.0
    %293 = vmatpush1.msra.mxu0 0.0
    %294 = vmatprep.subr.mxu0 0.0
    %295 = vmatpush1.msra.mxu0 0.0
    %296 = vmatprep.subr.mxu0 0.0
    %297 = vmatpush1.msra.mxu0 0.0
    %298 = vmatprep.subr.mxu0 0.0
    %299 = vmatpush1.msra.mxu0 0.0
    %300 = vmatprep.subr.mxu0 0.0
    %301 = vmatpush1.msra.mxu0 0.0
    %302 = vmatprep.subr.mxu0 0.0
    %303 = vmatpush1.msra.mxu0 0.0
    %304 = vmatprep.subr.mxu0 0.0
    %305 = vmatpush1.msra.mxu0 0.0
    %306 = vmatprep.subr.mxu0 0.0
    %307 = vmatpush1.msra.mxu0 0.0
    %308 = vmatprep.subr.mxu0 0.0
    %309 = vmatpush1.msra.mxu0 0.0
    %310 = vmatprep.subr.mxu0 0.0
    %311 = vmatpush1.msra.mxu0 0.0
    %312 = vmatprep.mubr.f32.mxu0 0.0
    %313 = vmatmul.mubr.f32.gmra.mrb[0].mxu0 %v240
    %v314 = vpop.f32.mrb[0].mxu0
    %v315 = vadd.f32 %v153, %v314
    %v316 = vpop.f32.mrb[0].mxu0
    %317 = vmatprep.mubr.f32.mxu0 0.0
    %318 = vmatmul.mubr.f32.gmra.mrb[0].mxu0 %v242
    %v319 = vpop.f32.mrb[0].mxu0
    %v320 = vadd.f32 %v153, %v319
    %v321 = vpop.f32.mrb[0].mxu0
    %322 = vmatprep.mubr.f32.mxu0 0.0
    %323 = vmatmul.mubr.f32.gmra.mrb[0].mxu0 %v244
    %v324 = vpop.f32.mrb[0].mxu0
    %v325 = vadd.f32 %v153, %v324
    %v326 = vpop.f32.mrb[0].mxu0
    %327 = vmatprep.mubr.f32.mxu0 0.0
    %328 = vmatmul.mubr.f32.gmra.mrb[0].mxu0 %v246
    %v329 = vpop.f32.mrb[0].mxu0
    %v330 = vadd.f32 %v153, %v329
    %v331 = vpop.f32.mrb[0].mxu0
    %332 = vdwg.mxu0
    %v337 = vcombine.high %v315, %v315
    %v339 = vunpack.c.l.s4 1983009808
    %v340 = vunpack.c.0.s8 %v339
    %v341 = vlaneseq
    %v342 = vshrl.u32 %v341, 7
    %v343 = vsub.s32 %v340, %v342
    %v344 = vrot.slane %v315, %v343
    %v346 = vunpack.c.l.s4 1983009808
    %v347 = vunpack.c.0.s8 %v346
    %v348 = vlaneseq
    %v349 = vshrl.u32 %v348, 7
    %v350 = vsub.s32 %v347, %v349
    %v351 = vrot.slane %v337, %v350
    %v352 = vcombine.high %v344, %v344
    %v353 = vcombine.high %v351, %v351
    %v354 = vcombine.high %v320, %v320
    %v356 = vunpack.c.l.s4 1983009808
    %v357 = vunpack.c.0.s8 %v356
    %v358 = vlaneseq
    %v359 = vshrl.u32 %v358, 7
    %v360 = vsub.s32 %v357, %v359
    %v361 = vrot.slane %v320, %v360
    %v363 = vunpack.c.l.s4 1983009808
    %v364 = vunpack.c.0.s8 %v363
    %v365 = vlaneseq
    %v366 = vshrl.u32 %v365, 7
    %v367 = vsub.s32 %v364, %v366
    %v368 = vrot.slane %v354, %v367
    %v369 = vcombine.high %v361, %v361
    %v370 = vcombine.high %v368, %v368
    %v371 = vcombine.high %v325, %v325
    %v373 = vunpack.c.l.s4 1983009808
    %v374 = vunpack.c.0.s8 %v373
    %v375 = vlaneseq
    %v376 = vshrl.u32 %v375, 7
    %v377 = vsub.s32 %v374, %v376
    %v378 = vrot.slane %v325, %v377
    %v380 = vunpack.c.l.s4 1983009808
    %v381 = vunpack.c.0.s8 %v380
    %v382 = vlaneseq
    %v383 = vshrl.u32 %v382, 7
    %v384 = vsub.s32 %v381, %v383
    %v385 = vrot.slane %v371, %v384
    %v386 = vcombine.high %v378, %v378
    %v387 = vcombine.high %v385, %v385
    %v388 = vcombine.high %v330, %v330
    %v390 = vunpack.c.l.s4 1983009808
    %v391 = vunpack.c.0.s8 %v390
    %v392 = vlaneseq
    %v393 = vshrl.u32 %v392, 7
    %v394 = vsub.s32 %v391, %v393
    %v395 = vrot.slane %v330, %v394
    %v397 = vunpack.c.l.s4 1983009808
    %v398 = vunpack.c.0.s8 %v397
    %v399 = vlaneseq
    %v400 = vshrl.u32 %v399, 7
    %v401 = vsub.s32 %v398, %v400
    %v402 = vrot.slane %v388, %v401
    %v403 = vcombine.high %v395, %v395
    %v404 = vcombine.high %v402, %v402
    %vm421 = vcmask 58368
    %422 = vst.msk [vmem:[%s4] sm:$0x3] %vm421, %v344
    %423 = vst.msk [vmem:[%s4 + $0x2] sm:$0x3] %vm421, %v352
    %424 = vst.msk [vmem:[%s4 + $0x4] sm:$0x3] %vm421, %v351
    %425 = vst.msk [vmem:[%s4 + $0x6] sm:$0x3] %vm421, %v353
    %426 = vst.msk [vmem:[%s4 + $0x8] sm:$0x3] %vm421, %v361
    %427 = vst.msk [vmem:[%s4 + $0xa] sm:$0x3] %vm421, %v369
    %428 = vst.msk [vmem:[%s4 + $0xc] sm:$0x3] %vm421, %v368
    %429 = vst.msk [vmem:[%s4 + $0xe] sm:$0x3] %vm421, %v370
    %430 = vst.msk [vmem:[%s4 + $0x10] sm:$0x3] %vm421, %v378
    %431 = vst.msk [vmem:[%s4 + $0x12] sm:$0x3] %vm421, %v386
    %432 = vst.msk [vmem:[%s4 + $0x14] sm:$0x3] %vm421, %v385
    %433 = vst.msk [vmem:[%s4 + $0x16] sm:$0x3] %vm421, %v387
    %434 = vst.msk [vmem:[%s4 + $0x18] sm:$0x3] %vm421, %v395
    %435 = vst.msk [vmem:[%s4 + $0x1a] sm:$0x3] %vm421, %v403
    %436 = vst.msk [vmem:[%s4 + $0x1c] sm:$0x3] %vm421, %v402
    %437 = vst.msk [vmem:[%s4 + $0x1e] sm:$0x3] %vm421, %v404
    // Predicated region
    $region22: #{conv_lstm_linear_forward.5} parent=1 // pred_check
      _
    $region23: #{conv_lstm_linear_forward.5} parent=1 // pred_check_branch
      %439 = sbr.rel (0) target = $region25
    $region24: #{conv_lstm_linear_forward.5} parent=1 // pred_region
      _
    $region25: #{conv_lstm_linear_forward.5} parent=1 // pred_fallthru
      _
    // Predicated region
    $region26: #{conv_lstm_linear_forward.5} parent=1 // pred_check
      _
    $region27: #{conv_lstm_linear_forward.5} parent=1 // pred_check_branch
      %441 = sbr.rel (0) target = $region29
    $region28: #{conv_lstm_linear_forward.5} parent=1 // pred_region
      _
    $region29: #{conv_lstm_linear_forward.5} parent=1 // pred_fallthru
      _
    %442 = vsyncpa [#allocation3], 1

// kernel: conv_lstm_linear_forward.3
$region0: #{conv_lstm_linear_forward.3}
  #allocation0 [shape = 'u32[]', space=smem, size = 0x4, offset = 0x4, fixed_abs, tag = 'smem constant byte address 0x4 - core index']
  #allocation1 [shape = 'u32[144,128]{1,0:T(1,128)}', space=vmem, size = 0x12000, scoped, tag = 'internal scratch']
  %s0 = inlined_call_operand.hbm [shape: f32[2,16,8], index: 0, kind: input, shape index: {}]
  %s1 = inlined_call_operand.hbm [shape: f32[2,16,1], index: 1, kind: input, shape index: {}]
  %s2 = inlined_call_operand.hbm [shape: f32[24,32], index: 2, kind: input, shape index: {}]
  %s3 = inlined_call_operand.hbm [shape: f32[96,32], index: 3, kind: input, shape index: {}]
  %s4 = inlined_call_operand.hbm [shape: f32[1,32], index: 4, kind: input, shape index: {}]
  %s5 = inlined_call_operand.hbm [shape: f32[1,32], index: 5, kind: input, shape index: {}]
  %s6 = inlined_call_operand.hbm [shape: f32[2,16,32], index: 6, kind: output, shape index: {}]
  %s7 = sld [smem:[#allocation0]]
  $region58: #{conv_lstm_linear_forward.3} parent=0
    _
  %s9 = ssub.s32 1, %s7
  %s10 = scalar_select 0, %s9, %s7
  $region1: #{conv_lstm_linear_forward.3} parent=0
    #allocation2 [shape = 'u8[16384]{0}', space=vmem, size = 0x4000, scoped, tag = 'input window, operand 0, single buffered']
    #allocation3 [shape = 's32[1]{0}', space=sflag, size = 0x4, scoped, tag = 'scoped memory for conv_lstm_linear_forward.3']
    #allocation4 [shape = 's32[1]{0}', space=sflag, size = 0x4, scoped, tag = 'scoped memory for conv_lstm_linear_forward.3']
    #allocation5 [shape = 'u8[16384]{0}', space=vmem, size = 0x4000, scoped, tag = 'input window, operand 1, single buffered']
    #allocation6 [shape = 's32[1]{0}', space=sflag, size = 0x4, scoped, tag = 'scoped memory for conv_lstm_linear_forward.3']
    #allocation7 [shape = 'u8[12288]{0}', space=vmem, size = 0x3000, scoped, tag = 'input window, operand 2, single buffered']
    #allocation8 [shape = 'u8[49152]{0}', space=vmem, size = 0xc000, scoped, tag = 'input window, operand 3, single buffered']
    #allocation9 [shape = 's32[1]{0}', space=sflag, size = 0x4, scoped, tag = 'scoped memory for conv_lstm_linear_forward.3']
    #allocation10 [shape = 'u8[512]{0}', space=vmem, size = 0x400, scoped, tag = 'input window, operand 4, single buffered']
    #allocation11 [shape = 'u8[512]{0}', space=vmem, size = 0x400, scoped, tag = 'input window, operand 5, single buffered']
    #allocation12 [shape = 's32[1]{0}', space=sflag, size = 0x4, scoped, tag = 'scoped memory for conv_lstm_linear_forward.3']
    #allocation13 [shape = 'u8[16384]{0}', space=vmem, size = 0x4000, scoped, tag = 'output window, operand 0, single buffered']
    %11 = vsyncpa [#allocation3], 0
    %12 = vsyncpa [#allocation6], 0
    %13 = vsyncpa [#allocation9], 0
    %14 = vsyncpa [#allocation12], 0
    %15 = vsyncpa [#allocation4], 0
    // Predicated region
    $region2: #{conv_lstm_linear_forward.3} parent=1 // pred_check
      _
    $region3: #{conv_lstm_linear_forward.3} parent=1 // pred_check_branch
      %17 = sbr.rel (0) target = $region5
    $region4: #{conv_lstm_linear_forward.3} parent=1 // pred_region
      %s19 = ssub.s32 512, 512
      %20 = vsyncadd [#allocation3], %s19
      %s21 = sshll.u32 [#allocation2], 4
      %s22 = int_to_ptr.vmem [resolvable:$true] %s21
      %27 = dma.hbm_to_vmem [thread:$0]  %s0, 512, %s22, [#allocation3], 128, 128, 8
    $region5: #{conv_lstm_linear_forward.3} parent=1 // pred_fallthru
      _
    // Predicated region
    $region6: #{conv_lstm_linear_forward.3} parent=1 // pred_check
      _
    $region7: #{conv_lstm_linear_forward.3} parent=1 // pred_check_branch
      %29 = sbr.rel (0) target = $region9
    $region8: #{conv_lstm_linear_forward.3} parent=1 // pred_region
      %s31 = ssub.s32 512, 512
      %32 = vsyncadd [#allocation6], %s31
      %s33 = sshll.u32 [#allocation5], 4
      %s34 = int_to_ptr.vmem [resolvable:$true] %s33
      %39 = dma.hbm_to_vmem [thread:$0]  %s1, 512, %s34, [#allocation6], 128, 128, 8
    $region9: #{conv_lstm_linear_forward.3} parent=1 // pred_fallthru
      _
    // Predicated region
    $region10: #{conv_lstm_linear_forward.3} parent=1 // pred_check
      _
    $region11: #{conv_lstm_linear_forward.3} parent=1 // pred_check_branch
      %41 = sbr.rel (0) target = $region13
    $region12: #{conv_lstm_linear_forward.3} parent=1 // pred_region
      %s43 = ssub.s32 384, 384
      %44 = vsyncadd [#allocation6], %s43
      %s45 = sshll.u32 [#allocation7], 4
      %s46 = int_to_ptr.vmem [resolvable:$true] %s45
      %51 = dma.hbm_to_vmem [thread:$0]  %s2, 384, %s46, [#allocation6], 128, 128, 8
    $region13: #{conv_lstm_linear_forward.3} parent=1 // pred_fallthru
      _
    // Predicated region
    $region14: #{conv_lstm_linear_forward.3} parent=1 // pred_check
      _
    $region15: #{conv_lstm_linear_forward.3} parent=1 // pred_check_branch
      %53 = sbr.rel (0) target = $region17
    $region16: #{conv_lstm_linear_forward.3} parent=1 // pred_region
      %s55 = ssub.s32 1536, 1536
      %56 = vsyncadd [#allocation9], %s55
      %s57 = sshll.u32 [#allocation8], 4
      %s58 = int_to_ptr.vmem [resolvable:$true] %s57
      %63 = dma.hbm_to_vmem [thread:$0]  %s3, 1536, %s58, [#allocation9], 128, 128, 8
    $region17: #{conv_lstm_linear_forward.3} parent=1 // pred_fallthru
      _
    // Predicated region
    $region18: #{conv_lstm_linear_forward.3} parent=1 // pred_check
      _
    $region19: #{conv_lstm_linear_forward.3} parent=1 // pred_check_branch
      %65 = sbr.rel (0) target = $region21
    $region20: #{conv_lstm_linear_forward.3} parent=1 // pred_region
      %s67 = ssub.s32 16, 16
      %68 = vsyncadd [#allocation9], %s67
      %s70 = sshll.u32 [#allocation10], 4
      %s71 = int_to_ptr.vmem [resolvable:$true] %s70
      %73 = dma.hbm_to_vmem [thread:$0]  %s4, 16, %s71, [#allocation9]
    $region21: #{conv_lstm_linear_forward.3} parent=1 // pred_fallthru
      _
    // Predicated region
    $region22: #{conv_lstm_linear_forward.3} parent=1 // pred_check
      _
    $region23: #{conv_lstm_linear_forward.3} parent=1 // pred_check_branch
      %75 = sbr.rel (0) target = $region25
    $region24: #{conv_lstm_linear_forward.3} parent=1 // pred_region
      %s77 = ssub.s32 16, 16
      %78 = vsyncadd [#allocation12], %s77
      %s80 = sshll.u32 [#allocation11], 4
      %s81 = int_to_ptr.vmem [resolvable:$true] %s80
      %83 = dma.hbm_to_vmem [thread:$0]  %s5, 16, %s81, [#allocation12]
    $region25: #{conv_lstm_linear_forward.3} parent=1 // pred_fallthru
      _
    // Predicated region
    $region26: #{conv_lstm_linear_forward.3} parent=1 // pred_check
      _
    $region27: #{conv_lstm_linear_forward.3} parent=1 // pred_check_branch
      %85 = sbr.rel (0) target = $region29
    $region28: #{conv_lstm_linear_forward.3} parent=1 // pred_region
      %86 = dma.done [#allocation3], 512
    $region29: #{conv_lstm_linear_forward.3} parent=1 // pred_fallthru
      _
    // Predicated region
    $region30: #{conv_lstm_linear_forward.3} parent=1 // pred_check
      _
    $region31: #{conv_lstm_linear_forward.3} parent=1 // pred_check_branch
      %88 = sbr.rel (0) target = $region33
    $region32: #{conv_lstm_linear_forward.3} parent=1 // pred_region
      %89 = dma.done [#allocation6], 512
    $region33: #{conv_lstm_linear_forward.3} parent=1 // pred_fallthru
      _
    // Predicated region
    $region34: #{conv_lstm_linear_forward.3} parent=1 // pred_check
      _
    $region35: #{conv_lstm_linear_forward.3} parent=1 // pred_check_branch
      %91 = sbr.rel (0) target = $region37
    $region36: #{conv_lstm_linear_forward.3} parent=1 // pred_region
      %92 = dma.done [#allocation6], 384
    $region37: #{conv_lstm_linear_forward.3} parent=1 // pred_fallthru
      _
    // Predicated region
    $region38: #{conv_lstm_linear_forward.3} parent=1 // pred_check
      _
    $region39: #{conv_lstm_linear_forward.3} parent=1 // pred_check_branch
      %94 = sbr.rel (0) target = $region41
    $region40: #{conv_lstm_linear_forward.3} parent=1 // pred_region
      %95 = dma.done [#allocation9], 1536
    $region41: #{conv_lstm_linear_forward.3} parent=1 // pred_fallthru
      _
    // Predicated region
    $region42: #{conv_lstm_linear_forward.3} parent=1 // pred_check
      _
    $region43: #{conv_lstm_linear_forward.3} parent=1 // pred_check_branch
      %97 = sbr.rel (0) target = $region45
    $region44: #{conv_lstm_linear_forward.3} parent=1 // pred_region
      %98 = dma.done [#allocation9], 16
    $region45: #{conv_lstm_linear_forward.3} parent=1 // pred_fallthru
      _
    // Predicated region
    $region46: #{conv_lstm_linear_forward.3} parent=1 // pred_check
      _
    $region47: #{conv_lstm_linear_forward.3} parent=1 // pred_check_branch
      %100 = sbr.rel (0) target = $region49
    $region48: #{conv_lstm_linear_forward.3} parent=1 // pred_region
      %101 = dma.done [#allocation12], 16
    $region49: #{conv_lstm_linear_forward.3} parent=1 // pred_fallthru
      _
    %v102 = vld [vmem:[#allocation5] sm:$0xff]
    %v103 = vld [vmem:[#allocation5 + $0x8] sm:$0xff]
    %v104 = vld [vmem:[#allocation5 + $0x10] sm:$0xff]
    %v105 = vld [vmem:[#allocation5 + $0x18] sm:$0xff]
    %v106 = vld [vmem:[#allocation2] sm:$0xff]
    %v107 = vld [vmem:[#allocation2 + $0x8] sm:$0xff]
    %v108 = vld [vmem:[#allocation2 + $0x10] sm:$0xff]
    %v109 = vld [vmem:[#allocation2 + $0x18] sm:$0xff]
    %111 = vset.pattern.permute.xlu0 0
    %112 = vperm.xlu0 %111, %v102
    %v113 = vpop.permute.xlu0 %112
    %116 = vset.pattern.permute.xlu0 0
    %117 = vperm.xlu0 %116, %v103
    %v118 = vpop.permute.xlu0 %117
    %121 = vset.pattern.permute.xlu0 0
    %122 = vperm.xlu0 %121, %v104
    %v123 = vpop.permute.xlu0 %122
    %126 = vset.pattern.permute.xlu0 0
    %127 = vperm.xlu0 %126, %v105
    %v128 = vpop.permute.xlu0 %127
    %v130 = vmul.f32 %v106, %v113
    %v131 = vmul.f32 %v107, %v118
    %v132 = vmul.f32 %v108, %v123
    %v133 = vmul.f32 %v109, %v128
    %vm138 = vcmask 1040384
    %v139 = vrot.slane %v130, 7
    %v140 = vrot.slane %v131, 7
    %v141 = vsel %vm138, %v139, %v140
    %v142 = vrot.slane %v132, 7
    %v143 = vrot.slane %v133, 7
    %v144 = vsel %vm138, %v142, %v143
    %v149 = vsel %vm138, 0.0, %v139
    %v150 = vsel %vm138, 0.0, %v142
    %vm151 = vcmask 1046528
    %v152 = vrot.slane %v130, 1
    %v153 = vrot.slane %v131, 1
    %v154 = vsel %vm151, %v152, %v153
    %v155 = vrot.slane %v132, 1
    %v156 = vrot.slane %v133, 1
    %v157 = vsel %vm151, %v155, %v156
    %v160 = vsel %vm151, %v153, 0.0
    %v161 = vsel %vm151, %v156, 0.0
    %162 = vrot.lane.b32.xlu0 %v130, 8
    %v163 = vpop.permute.xlu0 %162
    %164 = vrot.lane.b32.xlu0 %v131, 8
    %v165 = vpop.permute.xlu0 %164
    %166 = vrot.lane.b32.xlu0 %v132, 8
    %v167 = vpop.permute.xlu0 %166
    %168 = vrot.lane.b32.xlu0 %v133, 8
    %v169 = vpop.permute.xlu0 %168
    %176 = vrot.lane.b32.xlu0 %v154, 16
    %v177 = vpop.permute.xlu0 %176
    %178 = vrot.lane.b32.xlu0 %v160, 16
    %v179 = vpop.permute.xlu0 %178
    %180 = vrot.lane.b32.xlu0 %v157, 16
    %v181 = vpop.permute.xlu0 %180
    %182 = vrot.lane.b32.xlu0 %v161, 16
    %v183 = vpop.permute.xlu0 %182
    %vm188 = vcmask 64512
    %v189 = vsel %vm188, %v149, %v163
    %v190 = vsel %vm188, %v141, %v165
    %v191 = vsel %vm188, %v150, %v167
    %v192 = vsel %vm188, %v144, %v169
    %vm193 = vcmask 130048
    %v194 = vsel %vm193, %v189, %v177
    %v195 = vsel %vm193, %v190, %v179
    %v196 = vsel %vm193, %v191, %v181
    %v197 = vsel %vm193, %v192, %v183
    %v198 = vld [vmem:[#allocation7] sm:$0xff]
    %v199 = vld [vmem:[#allocation7 + $0x8] sm:$0xff]
    %v200 = vld [vmem:[#allocation7 + $0x10] sm:$0xff]
    %v201 = vld [vmem:[#allocation10] sm:$0x1]
    %v203 = vlaneseq
    %v204 = vshrl.u32 %v203, 7
    %v205 = vsub.s32 0, %v204
    %v206 = vrot.slane %v201, %v205
    %vm208 = vcmask 195584
    %v210 = vsel %vm208, %v194, 0
    %v213 = vsel %vm208, %v195, 0
    %v216 = vsel %vm208, %v196, 0
    %v219 = vsel %vm208, %v197, 0
    %221 = vmatprep.subr.mxu0 0.0
    %222 = vmatpush1.msra.mxu0 %v198
    %223 = vmatprep.subr.mxu0 0.0
    %224 = vmatpush1.msra.mxu0 %v199
    %225 = vmatprep.subr.mxu0 0.0
    %226 = vmatpush1.msra.mxu0 %v200
    %227 = vmatprep.subr.mxu0 0.0
    %228 = vmatpush1.msra.mxu0 0.0
    %229 = vmatprep.subr.mxu0 0.0
    %230 = vmatpush1.msra.mxu0 0.0
    %231 = vmatprep.subr.mxu0 0.0
    %232 = vmatpush1.msra.mxu0 0.0
    %233 = vmatprep.subr.mxu0 0.0
    %234 = vmatpush1.msra.mxu0 0.0
    %235 = vmatprep.subr.mxu0 0.0
    %236 = vmatpush1.msra.mxu0 0.0
    %237 = vmatprep.subr.mxu0 0.0
    %238 = vmatpush1.msra.mxu0 0.0
    %239 = vmatprep.subr.mxu0 0.0
    %240 = vmatpush1.msra.mxu0 0.0
    %241 = vmatprep.subr.mxu0 0.0
    %242 = vmatpush1.msra.mxu0 0.0
    %243 = vmatprep.subr.mxu0 0.0
    %244 = vmatpush1.msra.mxu0 0.0
    %245 = vmatprep.subr.mxu0 0.0
    %246 = vmatpush1.msra.mxu0 0.0
    %247 = vmatprep.subr.mxu0 0.0
    %248 = vmatpush1.msra.mxu0 0.0
    %249 = vmatprep.subr.mxu0 0.0
    %250 = vmatpush1.msra.mxu0 0.0
    %251 = vmatprep.subr.mxu0 0.0
    %252 = vmatpush1.msra.mxu0 0.0
    %253 = vmatprep.subr.mxu0 0.0
    %254 = vmatpush1.msra.mxu0 0.0
    %255 = vmatprep.subr.mxu0 0.0
    %256 = vmatpush1.msra.mxu0 0.0
    %257 = vmatprep.subr.mxu0 0.0
    %258 = vmatpush1.msra.mxu0 0.0
    %259 = vmatprep.subr.mxu0 0.0
    %260 = vmatpush1.msra.mxu0 0.0
    %261 = vmatprep.subr.mxu0 0.0
    %262 = vmatpush1.msra.mxu0 0.0
    %263 = vmatprep.subr.mxu0 0.0
    %264 = vmatpush1.msra.mxu0 0.0
    %265 = vmatprep.subr.mxu0 0.0
    %266 = vmatpush1.msra.mxu0 0.0
    %267 = vmatprep.subr.mxu0 0.0
    %268 = vmatpush1.msra.mxu0 0.0
    %269 = vmatprep.subr.mxu0 0.0
    %270 = vmatpush1.msra.mxu0 0.0
    %271 = vmatprep.subr.mxu0 0.0
    %272 = vmatpush1.msra.mxu0 0.0
    %273 = vmatprep.subr.mxu0 0.0
    %274 = vmatpush1.msra.mxu0 0.0
    %275 = vmatprep.subr.mxu0 0.0
    %276 = vmatpush1.msra.mxu0 0.0
    %277 = vmatprep.subr.mxu0 0.0
    %278 = vmatpush1.msra.mxu0 0.0
    %279 = vmatprep.subr.mxu0 0.0
    %280 = vmatpush1.msra.mxu0 0.0
    %281 = vmatprep.subr.mxu0 0.0
    %282 = vmatpush1.msra.mxu0 0.0
    %283 = vmatprep.subr.mxu0 0.0
    %284 = vmatpush1.msra.mxu0 0.0
    %285 = vmatprep.mubr.f32.mxu0 0.0
    %286 = vmatmul.mubr.f32.gmra.mrb[0].mxu0 %v210
    %v287 = vpop.f32.mrb[0].mxu0
    %v288 = vadd.f32 %v206, %v287
    %v289 = vpop.f32.mrb[0].mxu0
    %290 = vmatprep.mubr.f32.mxu0 0.0
    %291 = vmatmul.mubr.f32.gmra.mrb[0].mxu0 %v213
    %v292 = vpop.f32.mrb[0].mxu0
    %v293 = vadd.f32 %v206, %v292
    %v294 = vpop.f32.mrb[0].mxu0
    %295 = vmatprep.mubr.f32.mxu0 0.0
    %296 = vmatmul.mubr.f32.gmra.mrb[0].mxu0 %v216
    %v297 = vpop.f32.mrb[0].mxu0
    %v298 = vadd.f32 %v206, %v297
    %v299 = vpop.f32.mrb[0].mxu0
    %300 = vmatprep.mubr.f32.mxu0 0.0
    %301 = vmatmul.mubr.f32.gmra.mrb[0].mxu0 %v219
    %v302 = vpop.f32.mrb[0].mxu0
    %v303 = vadd.f32 %v206, %v302
    %v304 = vpop.f32.mrb[0].mxu0
    %305 = vdwg.mxu0
    %v306 = vmax.f32 %v288, 0.0
    %v307 = vmax.f32 %v293, 0.0
    %v308 = vmax.f32 %v298, 0.0
    %v309 = vmax.f32 %v303, 0.0
    %v310 = vmul.f32 %v306, %v113
    %v311 = vmul.f32 %v307, %v118
    %v312 = vmul.f32 %v308, %v123
    %v313 = vmul.f32 %v309, %v128
    %v318 = vrot.slane %v310, 7
    %v319 = vrot.slane %v311, 7
    %v320 = vsel %vm138, %v318, %v319
    %v321 = vrot.slane %v312, 7
    %v322 = vrot.slane %v313, 7
    %v323 = vsel %vm138, %v321, %v322
    %v328 = vsel %vm138, 0.0, %v318
    %v329 = vsel %vm138, 0.0, %v321
    %v330 = vrot.slane %v310, 1
    %v331 = vrot.slane %v311, 1
    %v332 = vsel %vm151, %v330, %v331
    %v333 = vrot.slane %v312, 1
    %v334 = vrot.slane %v313, 1
    %v335 = vsel %vm151, %v333, %v334
    %v338 = vsel %vm151, %v331, 0.0
    %v339 = vsel %vm151, %v334, 0.0
    %340 = vrot.lane.b32.xlu0 %v310, 32
    %v341 = vpop.permute.xlu0 %340
    %342 = vrot.lane.b32.xlu0 %v311, 32
    %v343 = vpop.permute.xlu0 %342
    %344 = vrot.lane.b32.xlu0 %v312, 32
    %v345 = vpop.permute.xlu0 %344
    %346 = vrot.lane.b32.xlu0 %v313, 32
    %v347 = vpop.permute.xlu0 %346
    %354 = vrot.lane.b32.xlu0 %v332, 64
    %v355 = vpop.permute.xlu0 %354
    %356 = vrot.lane.b32.xlu0 %v338, 64
    %v357 = vpop.permute.xlu0 %356
    %358 = vrot.lane.b32.xlu0 %v335, 64
    %v359 = vpop.permute.xlu0 %358
    %360 = vrot.lane.b32.xlu0 %v339, 64
    %v361 = vpop.permute.xlu0 %360
    %vm366 = vcmask 261120
    %v367 = vsel %vm366, %v328, %v341
    %v368 = vsel %vm366, %v320, %v343
    %v369 = vsel %vm366, %v329, %v345
    %v370 = vsel %vm366, %v323, %v347
    %vm371 = vcmask 523264
    %v372 = vsel %vm371, %v367, %v355
    %v373 = vsel %vm371, %v368, %v357
    %v374 = vsel %vm371, %v369, %v359
    %v375 = vsel %vm371, %v370, %v361
    %v376 = vld [vmem:[#allocation8] sm:$0xff]
    %v377 = vld [vmem:[#allocation8 + $0x8] sm:$0xff]
    %v378 = vld [vmem:[#allocation8 + $0x10] sm:$0xff]
    %v379 = vld [vmem:[#allocation8 + $0x18] sm:$0xff]
    %v380 = vld [vmem:[#allocation8 + $0x20] sm:$0xff]
    %v381 = vld [vmem:[#allocation8 + $0x28] sm:$0xff]
    %v382 = vld [vmem:[#allocation8 + $0x30] sm:$0xff]
    %v383 = vld [vmem:[#allocation8 + $0x38] sm:$0xff]
    %v384 = vld [vmem:[#allocation8 + $0x40] sm:$0xff]
    %v385 = vld [vmem:[#allocation8 + $0x48] sm:$0xff]
    %v386 = vld [vmem:[#allocation8 + $0x50] sm:$0xff]
    %v387 = vld [vmem:[#allocation8 + $0x58] sm:$0xff]
    %v388 = vld [vmem:[#allocation11] sm:$0x1]
    %v390 = vlaneseq
    %v391 = vshrl.u32 %v390, 7
    %v392 = vsub.s32 0, %v391
    %v393 = vrot.slane %v388, %v392
    %vm395 = vcmask 785408
    %v397 = vsel %vm395, %v372, 0
    %v400 = vsel %vm395, %v373, 0
    %v403 = vsel %vm395, %v374, 0
    %v406 = vsel %vm395, %v375, 0
    %408 = vmatprep.subr.mxu0 0.0
    %409 = vmatpush1.msra.mxu0 %v376
    %410 = vmatprep.subr.mxu0 0.0
    %411 = vmatpush1.msra.mxu0 %v377
    %412 = vmatprep.subr.mxu0 0.0
    %413 = vmatpush1.msra.mxu0 %v378
    %414 = vmatprep.subr.mxu0 0.0
    %415 = vmatpush1.msra.mxu0 %v379
    %416 = vmatprep.subr.mxu0 0.0
    %417 = vmatpush1.msra.mxu0 %v380
    %418 = vmatprep.subr.mxu0 0.0
    %419 = vmatpush1.msra.mxu0 %v381
    %420 = vmatprep.subr.mxu0 0.0
    %421 = vmatpush1.msra.mxu0 %v382
    %422 = vmatprep.subr.mxu0 0.0
    %423 = vmatpush1.msra.mxu0 %v383
    %424 = vmatprep.subr.mxu0 0.0
    %425 = vmatpush1.msra.mxu0 %v384
    %426 = vmatprep.subr.mxu0 0.0
    %427 = vmatpush1.msra.mxu0 %v385
    %428 = vmatprep.subr.mxu0 0.0
    %429 = vmatpush1.msra.mxu0 %v386
    %430 = vmatprep.subr.mxu0 0.0
    %431 = vmatpush1.msra.mxu0 %v387
    %432 = vmatprep.subr.mxu0 0.0
    %433 = vmatpush1.msra.mxu0 0.0
    %434 = vmatprep.subr.mxu0 0.0
    %435 = vmatpush1.msra.mxu0 0.0
    %436 = vmatprep.subr.mxu0 0.0
    %437 = vmatpush1.msra.mxu0 0.0
    %438 = vmatprep.subr.mxu0 0.0
    %439 = vmatpush1.msra.mxu0 0.0
    %440 = vmatprep.subr.mxu0 0.0
    %441 = vmatpush1.msra.mxu0 0.0
    %442 = vmatprep.subr.mxu0 0.0
    %443 = vmatpush1.msra.mxu0 0.0
    %444 = vmatprep.subr.mxu0 0.0
    %445 = vmatpush1.msra.mxu0 0.0
    %446 = vmatprep.subr.mxu0 0.0
    %447 = vmatpush1.msra.mxu0 0.0
    %448 = vmatprep.subr.mxu0 0.0
    %449 = vmatpush1.msra.mxu0 0.0
    %450 = vmatprep.subr.mxu0 0.0
    %451 = vmatpush1.msra.mxu0 0.0
    %452 = vmatprep.subr.mxu0 0.0
    %453 = vmatpush1.msra.mxu0 0.0
    %454 = vmatprep.subr.mxu0 0.0
    %455 = vmatpush1.msra.mxu0 0.0
    %456 = vmatprep.subr.mxu0 0.0
    %457 = vmatpush1.msra.mxu0 0.0
    %458 = vmatprep.subr.mxu0 0.0
    %459 = vmatpush1.msra.mxu0 0.0
    %460 = vmatprep.subr.mxu0 0.0
    %461 = vmatpush1.msra.mxu0 0.0
    %462 = vmatprep.subr.mxu0 0.0
    %463 = vmatpush1.msra.mxu0 0.0
    %464 = vmatprep.subr.mxu0 0.0
    %465 = vmatpush1.msra.mxu0 0.0
    %466 = vmatprep.subr.mxu0 0.0
    %467 = vmatpush1.msra.mxu0 0.0
    %468 = vmatprep.subr.mxu0 0.0
    %469 = vmatpush1.msra.mxu0 0.0
    %470 = vmatprep.subr.mxu0 0.0
    %471 = vmatpush1.msra.mxu0 0.0
    %472 = vmatprep.mubr.f32.mxu0 0.0
    %473 = vmatmul.mubr.f32.gmra.mrb[0].mxu0 %v397
    %v474 = vpop.f32.mrb[0].mxu0
    %v475 = vadd.f32 %v393, %v474
    %v476 = vpop.f32.mrb[0].mxu0
    %477 = vmatprep.mubr.f32.mxu0 0.0
    %478 = vmatmul.mubr.f32.gmra.mrb[0].mxu0 %v400
    %v479 = vpop.f32.mrb[0].mxu0
    %v480 = vadd.f32 %v393, %v479
    %v481 = vpop.f32.mrb[0].mxu0
    %482 = vmatprep.mubr.f32.mxu0 0.0
    %483 = vmatmul.mubr.f32.gmra.mrb[0].mxu0 %v403
    %v484 = vpop.f32.mrb[0].mxu0
    %v485 = vadd.f32 %v393, %v484
    %v486 = vpop.f32.mrb[0].mxu0
    %487 = vmatprep.mubr.f32.mxu0 0.0
    %488 = vmatmul.mubr.f32.gmra.mrb[0].mxu0 %v406
    %v489 = vpop.f32.mrb[0].mxu0
    %v490 = vadd.f32 %v393, %v489
    %v491 = vpop.f32.mrb[0].mxu0
    %492 = vdwg.mxu0
    %v493 = vmax.f32 %v475, 0.0
    %v494 = vmax.f32 %v480, 0.0
    %v495 = vmax.f32 %v485, 0.0
    %v496 = vmax.f32 %v490, 0.0
    %v497 = vmul.f32 %v493, %v113
    %v498 = vmul.f32 %v494, %v118
    %v499 = vmul.f32 %v495, %v123
    %v500 = vmul.f32 %v496, %v128
    %501 = vst.msk [vmem:[#allocation13] sm:$0xff] %vm366, %v497
    %502 = vst.msk [vmem:[#allocation13 + $0x8] sm:$0xff] %vm366, %v498
    %503 = vst.msk [vmem:[#allocation13 + $0x10] sm:$0xff] %vm366, %v499
    %504 = vst.msk [vmem:[#allocation13 + $0x18] sm:$0xff] %vm366, %v500
    // Predicated region
    $region50: #{conv_lstm_linear_forward.3} parent=1 // pred_check
      _
    $region51: #{conv_lstm_linear_forward.3} parent=1 // pred_check_branch
      %506 = sbr.rel (0) target = $region53
    $region52: #{conv_lstm_linear_forward.3} parent=1 // pred_region
      %s508 = ssub.s32 512, 512
      %509 = vsyncadd [#allocation4], %s508
      %s510 = sshll.u32 [#allocation13], 4
      %s511 = int_to_ptr.vmem [resolvable:$true] %s510
      %516 = dma.vmem_to_hbm [thread:$0]  %s511, 512, %s6, [#allocation4], 128, 128, 8
    $region53: #{conv_lstm_linear_forward.3} parent=1 // pred_fallthru
      _
    // Predicated region
    $region54: #{conv_lstm_linear_forward.3} parent=1 // pred_check
      _
    $region55: #{conv_lstm_linear_forward.3} parent=1 // pred_check_branch
      %518 = sbr.rel (0) target = $region57
    $region56: #{conv_lstm_linear_forward.3} parent=1 // pred_region
      %519 = dma.done [#allocation4], 512
    $region57: #{conv_lstm_linear_forward.3} parent=1 // pred_fallthru
      _
    %520 = vsyncpa [#allocation3], 1
    %521 = vsyncpa [#allocation6], 1
    %522 = vsyncpa [#allocation9], 1
    %523 = vsyncpa [#allocation12], 1
    %524 = vsyncpa [#allocation4], 1

// kernel: conv_lstm_linear_forward.4
$region0: #{conv_lstm_linear_forward.4}
  #allocation0 [shape = 'u32[]', space=smem, size = 0x4, offset = 0x4, fixed_abs, tag = 'smem constant byte address 0x4 - core index']
  #allocation1 [shape = 'u32[144,128]{1,0:T(1,128)}', space=vmem, size = 0x12000, scoped, tag = 'internal scratch']
  #allocation2 [shape = 'f32[16,2,64]{2,1,0:T(2,128)}', space=vmem, size = 0x4000, scoped, tag = 'scratch operand']
  #allocation3 [shape = 'f32[16,2,64]{2,1,0:T(2,128)}', space=vmem, size = 0x4000, scoped, tag = 'scratch operand']
  #allocation4 [shape = 'f32[16,2,16]{2,1,0:T(2,128)}', space=vmem, size = 0x4000, scoped, tag = 'scratch operand']
  #allocation5 [shape = 'f32[16,2,16]{2,1,0:T(2,128)}', space=vmem, size = 0x4000, scoped, tag = 'scratch operand']
  %s0 = inlined_call_operand.hbm [shape: f32[16,2,32], index: 0, kind: input, shape index: {}]
  %s1 = inlined_call_operand.hbm [shape: f32[16,2,1], index: 1, kind: input, shape index: {}]
  %s2 = inlined_call_operand.hbm [shape: f32[32,64], index: 2, kind: input, shape index: {}]
  %s3 = inlined_call_operand.hbm [shape: f32[16,64], index: 3, kind: input, shape index: {}]
  %s4 = inlined_call_operand.hbm [shape: f32[1,64], index: 4, kind: input, shape index: {}]
  %s5 = inlined_call_operand.hbm [shape: f32[32,64], index: 5, kind: input, shape index: {}]
  %s6 = inlined_call_operand.hbm [shape: f32[16,64], index: 6, kind: input, shape index: {}]
  %s7 = inlined_call_operand.hbm [shape: f32[1,64], index: 7, kind: input, shape index: {}]
  %s8 = inlined_call_operand.hbm [shape: f32[16,2,16], index: 8, kind: output, shape index: {0}]
  %s9 = inlined_call_operand.hbm [shape: f32[16,2,16], index: 9, kind: output, shape index: {1}]
  %10 = xla_tuple %s8, %s9
  %s11 = sld [smem:[#allocation0]]
  $region89: #{conv_lstm_linear_forward.4} parent=0
    _
  %s13 = ssub.s32 1, %s11
  %s14 = scalar_select 0, %s13, %s11
  $region1: #{conv_lstm_linear_forward.4} parent=0
    #allocation6 [shape = 'u8[16384]{0}', space=vmem, size = 0x4000, scoped, tag = 'input window, operand 0, single buffered']
    #allocation7 [shape = 's32[1]{0}', space=sflag, size = 0x4, scoped, tag = 'scoped memory for conv_lstm_linear_forward.4']
    #allocation8 [shape = 's32[1]{0}', space=sflag, size = 0x4, scoped, tag = 'scoped memory for conv_lstm_linear_forward.4']
    #allocation9 [shape = 'u8[16384]{0}', space=vmem, size = 0x4000, scoped, tag = 'input window, operand 1, single buffered']
    #allocation10 [shape = 's32[1]{0}', space=sflag, size = 0x4, scoped, tag = 'scoped memory for conv_lstm_linear_forward.4']
    #allocation11 [shape = 'u8[16384]{0}', space=vmem, size = 0x4000, scoped, tag = 'input window, operand 2, single buffered']
    #allocation12 [shape = 'u8[8192]{0}', space=vmem, size = 0x2000, scoped, tag = 'input window, operand 3, single buffered']
    #allocation13 [shape = 's32[1]{0}', space=sflag, size = 0x4, scoped, tag = 'scoped memory for conv_lstm_linear_forward.4']
    #allocation14 [shape = 'u8[512]{0}', space=vmem, size = 0x400, scoped, tag = 'input window, operand 4, single buffered']
    #allocation15 [shape = 'u8[16384]{0}', space=vmem, size = 0x4000, scoped, tag = 'input window, operand 5, single buffered']
    #allocation16 [shape = 's32[1]{0}', space=sflag, size = 0x4, scoped, tag = 'scoped memory for conv_lstm_linear_forward.4']
    #allocation17 [shape = 'u8[8192]{0}', space=vmem, size = 0x2000, scoped, tag = 'input window, operand 6, single buffered']
    #allocation18 [shape = 'u8[512]{0}', space=vmem, size = 0x400, scoped, tag = 'input window, operand 7, single buffered']
    #allocation19 [shape = 's32[1]{0}', space=sflag, size = 0x4, scoped, tag = 'scoped memory for conv_lstm_linear_forward.4']
    #allocation20 [shape = 'u8[16384]{0}', space=vmem, size = 0x4000, scoped, tag = 'output window, operand 0, single buffered']
    #allocation21 [shape = 'u8[16384]{0}', space=vmem, size = 0x4000, scoped, tag = 'output window, operand 1, single buffered']
    #allocation22 [shape = 's32[1]{0}', space=sflag, size = 0x4, scoped, tag = 'scoped memory for conv_lstm_linear_forward.4']
    %15 = vsyncpa [#allocation7], 0
    %16 = vsyncpa [#allocation10], 0
    %17 = vsyncpa [#allocation13], 0
    %18 = vsyncpa [#allocation16], 0
    %19 = vsyncpa [#allocation19], 0
    %20 = vsyncpa [#allocation8], 0
    %21 = vsyncpa [#allocation22], 0
    // Predicated region
    $region2: #{conv_lstm_linear_forward.4} parent=1 // pred_check
      _
    $region3: #{conv_lstm_linear_forward.4} parent=1 // pred_check_branch
      %23 = sbr.rel (0) target = $region5
    $region4: #{conv_lstm_linear_forward.4} parent=1 // pred_region
      %s25 = ssub.s32 512, 512
      %26 = vsyncadd [#allocation7], %s25
      %s27 = sshll.u32 [#allocation6], 4
      %s28 = int_to_ptr.vmem [resolvable:$true] %s27
      %33 = dma.hbm_to_vmem [thread:$0]  %s0, 512, %s28, [#allocation7], 32, 32, 2
    $region5: #{conv_lstm_linear_forward.4} parent=1 // pred_fallthru
      _
    // Predicated region
    $region6: #{conv_lstm_linear_forward.4} parent=1 // pred_check
      _
    $region7: #{conv_lstm_linear_forward.4} parent=1 // pred_check_branch
      %35 = sbr.rel (0) target = $region9
    $region8: #{conv_lstm_linear_forward.4} parent=1 // pred_region
      %s37 = ssub.s32 512, 512
      %38 = vsyncadd [#allocation10], %s37
      %s39 = sshll.u32 [#allocation9], 4
      %s40 = int_to_ptr.vmem [resolvable:$true] %s39
      %45 = dma.hbm_to_vmem [thread:$0]  %s1, 512, %s40, [#allocation10], 32, 32, 2
    $region9: #{conv_lstm_linear_forward.4} parent=1 // pred_fallthru
      _
    // Predicated region
    $region10: #{conv_lstm_linear_forward.4} parent=1 // pred_check
      _
    $region11: #{conv_lstm_linear_forward.4} parent=1 // pred_check_branch
      %47 = sbr.rel (0) target = $region13
    $region12: #{conv_lstm_linear_forward.4} parent=1 // pred_region
      %s49 = ssub.s32 512, 512
      %50 = vsyncadd [#allocation10], %s49
      %s51 = sshll.u32 [#allocation11], 4
      %s52 = int_to_ptr.vmem [resolvable:$true] %s51
      %57 = dma.hbm_to_vmem [thread:$0]  %s2, 512, %s52, [#allocation10], 128, 128, 8
    $region13: #{conv_lstm_linear_forward.4} parent=1 // pred_fallthru
      _
    // Predicated region
    $region14: #{conv_lstm_linear_forward.4} parent=1 // pred_check
      _
    $region15: #{conv_lstm_linear_forward.4} parent=1 // pred_check_branch
      %59 = sbr.rel (0) target = $region17
    $region16: #{conv_lstm_linear_forward.4} parent=1 // pred_region
      %s61 = ssub.s32 256, 256
      %62 = vsyncadd [#allocation13], %s61
      %s63 = sshll.u32 [#allocation12], 4
      %s64 = int_to_ptr.vmem [resolvable:$true] %s63
      %69 = dma.hbm_to_vmem [thread:$0]  %s3, 256, %s64, [#allocation13], 128, 128, 8
    $region17: #{conv_lstm_linear_forward.4} parent=1 // pred_fallthru
      _
    // Predicated region
    $region18: #{conv_lstm_linear_forward.4} parent=1 // pred_check
      _
    $region19: #{conv_lstm_linear_forward.4} parent=1 // pred_check_branch
      %71 = sbr.rel (0) target = $region21
    $region20: #{conv_lstm_linear_forward.4} parent=1 // pred_region
      %s73 = ssub.s32 16, 16
      %74 = vsyncadd [#allocation13], %s73
      %s76 = sshll.u32 [#allocation14], 4
      %s77 = int_to_ptr.vmem [resolvable:$true] %s76
      %79 = dma.hbm_to_vmem [thread:$0]  %s4, 16, %s77, [#allocation13]
    $region21: #{conv_lstm_linear_forward.4} parent=1 // pred_fallthru
      _
    // Predicated region
    $region22: #{conv_lstm_linear_forward.4} parent=1 // pred_check
      _
    $region23: #{conv_lstm_linear_forward.4} parent=1 // pred_check_branch
      %81 = sbr.rel (0) target = $region25
    $region24: #{conv_lstm_linear_forward.4} parent=1 // pred_region
      %s83 = ssub.s32 512, 512
      %84 = vsyncadd [#allocation16], %s83
      %s85 = sshll.u32 [#allocation15], 4
      %s86 = int_to_ptr.vmem [resolvable:$true] %s85
      %91 = dma.hbm_to_vmem [thread:$0]  %s5, 512, %s86, [#allocation16], 128, 128, 8
    $region25: #{conv_lstm_linear_forward.4} parent=1 // pred_fallthru
      _
    // Predicated region
    $region26: #{conv_lstm_linear_forward.4} parent=1 // pred_check
      _
    $region27: #{conv_lstm_linear_forward.4} parent=1 // pred_check_branch
      %93 = sbr.rel (0) target = $region29
    $region28: #{conv_lstm_linear_forward.4} parent=1 // pred_region
      %s95 = ssub.s32 256, 256
      %96 = vsyncadd [#allocation16], %s95
      %s97 = sshll.u32 [#allocation17], 4
      %s98 = int_to_ptr.vmem [resolvable:$true] %s97
      %103 = dma.hbm_to_vmem [thread:$0]  %s6, 256, %s98, [#allocation16], 128, 128, 8
    $region29: #{conv_lstm_linear_forward.4} parent=1 // pred_fallthru
      _
    // Predicated region
    $region30: #{conv_lstm_linear_forward.4} parent=1 // pred_check
      _
    $region31: #{conv_lstm_linear_forward.4} parent=1 // pred_check_branch
      %105 = sbr.rel (0) target = $region33
    $region32: #{conv_lstm_linear_forward.4} parent=1 // pred_region
      %s107 = ssub.s32 16, 16
      %108 = vsyncadd [#allocation19], %s107
      %s110 = sshll.u32 [#allocation18], 4
      %s111 = int_to_ptr.vmem [resolvable:$true] %s110
      %113 = dma.hbm_to_vmem [thread:$0]  %s7, 16, %s111, [#allocation19]
    $region33: #{conv_lstm_linear_forward.4} parent=1 // pred_fallthru
      _
    // Predicated region
    $region34: #{conv_lstm_linear_forward.4} parent=1 // pred_check
      _
    $region35: #{conv_lstm_linear_forward.4} parent=1 // pred_check_branch
      %115 = sbr.rel (0) target = $region37
    $region36: #{conv_lstm_linear_forward.4} parent=1 // pred_region
      %116 = dma.done [#allocation7], 512
    $region37: #{conv_lstm_linear_forward.4} parent=1 // pred_fallthru
      _
    // Predicated region
    $region38: #{conv_lstm_linear_forward.4} parent=1 // pred_check
      _
    $region39: #{conv_lstm_linear_forward.4} parent=1 // pred_check_branch
      %118 = sbr.rel (0) target = $region41
    $region40: #{conv_lstm_linear_forward.4} parent=1 // pred_region
      %119 = dma.done [#allocation10], 512
    $region41: #{conv_lstm_linear_forward.4} parent=1 // pred_fallthru
      _
    // Predicated region
    $region42: #{conv_lstm_linear_forward.4} parent=1 // pred_check
      _
    $region43: #{conv_lstm_linear_forward.4} parent=1 // pred_check_branch
      %121 = sbr.rel (0) target = $region45
    $region44: #{conv_lstm_linear_forward.4} parent=1 // pred_region
      %122 = dma.done [#allocation10], 512
    $region45: #{conv_lstm_linear_forward.4} parent=1 // pred_fallthru
      _
    // Predicated region
    $region46: #{conv_lstm_linear_forward.4} parent=1 // pred_check
      _
    $region47: #{conv_lstm_linear_forward.4} parent=1 // pred_check_branch
      %124 = sbr.rel (0) target = $region49
    $region48: #{conv_lstm_linear_forward.4} parent=1 // pred_region
      %125 = dma.done [#allocation13], 256
    $region49: #{conv_lstm_linear_forward.4} parent=1 // pred_fallthru
      _
    // Predicated region
    $region50: #{conv_lstm_linear_forward.4} parent=1 // pred_check
      _
    $region51: #{conv_lstm_linear_forward.4} parent=1 // pred_check_branch
      %127 = sbr.rel (0) target = $region53
    $region52: #{conv_lstm_linear_forward.4} parent=1 // pred_region
      %128 = dma.done [#allocation13], 16
    $region53: #{conv_lstm_linear_forward.4} parent=1 // pred_fallthru
      _
    // Predicated region
    $region54: #{conv_lstm_linear_forward.4} parent=1 // pred_check
      _
    $region55: #{conv_lstm_linear_forward.4} parent=1 // pred_check_branch
      %130 = sbr.rel (0) target = $region57
    $region56: #{conv_lstm_linear_forward.4} parent=1 // pred_region
      %131 = dma.done [#allocation16], 512
    $region57: #{conv_lstm_linear_forward.4} parent=1 // pred_fallthru
      _
    // Predicated region
    $region58: #{conv_lstm_linear_forward.4} parent=1 // pred_check
      _
    $region59: #{conv_lstm_linear_forward.4} parent=1 // pred_check_branch
      %133 = sbr.rel (0) target = $region61
    $region60: #{conv_lstm_linear_forward.4} parent=1 // pred_region
      %134 = dma.done [#allocation16], 256
    $region61: #{conv_lstm_linear_forward.4} parent=1 // pred_fallthru
      _
    // Predicated region
    $region62: #{conv_lstm_linear_forward.4} parent=1 // pred_check
      _
    $region63: #{conv_lstm_linear_forward.4} parent=1 // pred_check_branch
      %136 = sbr.rel (0) target = $region65
    $region64: #{conv_lstm_linear_forward.4} parent=1 // pred_region
      %137 = dma.done [#allocation19], 16
    $region65: #{conv_lstm_linear_forward.4} parent=1 // pred_fallthru
      _
    %v138 = vld [vmem:[#allocation12] sm:$0xff]
    %v139 = vld [vmem:[#allocation12 + $0x8] sm:$0xff]
    %v140 = vld [vmem:[#allocation17] sm:$0xff]
    %v141 = vld [vmem:[#allocation17 + $0x8] sm:$0xff]
    %v142 = vld [vmem:[#allocation6] sm:$0x3]
    %v143 = vld [vmem:[#allocation6 + $0x2] sm:$0x3]
    %v144 = vld [vmem:[#allocation6 + $0x4] sm:$0x3]
    %v145 = vld [vmem:[#allocation6 + $0x6] sm:$0x3]
    %v146 = vld [vmem:[#allocation6 + $0x8] sm:$0x3]
    %v147 = vld [vmem:[#allocation6 + $0xa] sm:$0x3]
    %v148 = vld [vmem:[#allocation6 + $0xc] sm:$0x3]
    %v149 = vld [vmem:[#allocation6 + $0xe] sm:$0x3]
    %v150 = vld [vmem:[#allocation6 + $0x10] sm:$0x3]
    %v151 = vld [vmem:[#allocation6 + $0x12] sm:$0x3]
    %v152 = vld [vmem:[#allocation6 + $0x14] sm:$0x3]
    %v153 = vld [vmem:[#allocation6 + $0x16] sm:$0x3]
    %v154 = vld [vmem:[#allocation6 + $0x18] sm:$0x3]
    %v155 = vld [vmem:[#allocation6 + $0x1a] sm:$0x3]
    %v156 = vld [vmem:[#allocation6 + $0x1c] sm:$0x3]
    %v157 = vld [vmem:[#allocation6 + $0x1e] sm:$0x3]
    %v158 = vld [vmem:[#allocation11] sm:$0xff]
    %v159 = vld [vmem:[#allocation11 + $0x8] sm:$0xff]
    %v160 = vld [vmem:[#allocation11 + $0x10] sm:$0xff]
    %v161 = vld [vmem:[#allocation11 + $0x18] sm:$0xff]
    %v162 = vld [vmem:[#allocation14] sm:$0x1]
    %v164 = vlaneseq
    %v165 = vshrl.u32 %v164, 7
    %v166 = vsub.s32 0, %v165
    %v167 = vrot.slane %v162, %v166
    %v185 = vcombine.low %v142, %v143
    %v186 = vcombine.low %v144, %v145
    %v188 = vunpack.c.l.s4 1983009808
    %v189 = vunpack.c.0.s8 %v188
    %v190 = vlaneseq
    %v191 = vshrl.u32 %v190, 7
    %v192 = vsub.s32 %v189, %v191
    %v193 = vrot.slane %v185, %v192
    %v195 = vunpack.c.l.s4 1983009808
    %v196 = vunpack.c.0.s8 %v195
    %v197 = vlaneseq
    %v198 = vshrl.u32 %v197, 7
    %v199 = vsub.s32 %v196, %v198
    %v200 = vrot.slane %v186, %v199
    %v201 = vcombine.low %v193, %v200
    %v202 = vcombine.low %v146, %v147
    %v203 = vcombine.low %v148, %v149
    %v205 = vunpack.c.l.s4 1983009808
    %v206 = vunpack.c.0.s8 %v205
    %v207 = vlaneseq
    %v208 = vshrl.u32 %v207, 7
    %v209 = vsub.s32 %v206, %v208
    %v210 = vrot.slane %v202, %v209
    %v212 = vunpack.c.l.s4 1983009808
    %v213 = vunpack.c.0.s8 %v212
    %v214 = vlaneseq
    %v215 = vshrl.u32 %v214, 7
    %v216 = vsub.s32 %v213, %v215
    %v217 = vrot.slane %v203, %v216
    %v218 = vcombine.low %v210, %v217
    %v219 = vcombine.low %v150, %v151
    %v220 = vcombine.low %v152, %v153
    %v222 = vunpack.c.l.s4 1983009808
    %v223 = vunpack.c.0.s8 %v222
    %v224 = vlaneseq
    %v225 = vshrl.u32 %v224, 7
    %v226 = vsub.s32 %v223, %v225
    %v227 = vrot.slane %v219, %v226
    %v229 = vunpack.c.l.s4 1983009808
    %v230 = vunpack.c.0.s8 %v229
    %v231 = vlaneseq
    %v232 = vshrl.u32 %v231, 7
    %v233 = vsub.s32 %v230, %v232
    %v234 = vrot.slane %v220, %v233
    %v235 = vcombine.low %v227, %v234
    %v236 = vcombine.low %v154, %v155
    %v237 = vcombine.low %v156, %v157
    %v239 = vunpack.c.l.s4 1983009808
    %v240 = vunpack.c.0.s8 %v239
    %v241 = vlaneseq
    %v242 = vshrl.u32 %v241, 7
    %v243 = vsub.s32 %v240, %v242
    %v244 = vrot.slane %v236, %v243
    %v246 = vunpack.c.l.s4 1983009808
    %v247 = vunpack.c.0.s8 %v246
    %v248 = vlaneseq
    %v249 = vshrl.u32 %v248, 7
    %v250 = vsub.s32 %v247, %v249
    %v251 = vrot.slane %v237, %v250
    %v252 = vcombine.low %v244, %v251
    %vm253 = vcmask 261120
    %v254 = vsel %vm253, %v201, 0
    %v256 = vsel %vm253, %v218, 0
    %v258 = vsel %vm253, %v235, 0
    %v260 = vsel %vm253, %v252, 0
    %262 = vmatprep.subr.mxu0 0.0
    %263 = vmatpush1.msra.mxu0 %v158
    %264 = vmatprep.subr.mxu0 0.0
    %265 = vmatpush1.msra.mxu0 %v159
    %266 = vmatprep.subr.mxu0 0.0
    %267 = vmatpush1.msra.mxu0 %v160
    %268 = vmatprep.subr.mxu0 0.0
    %269 = vmatpush1.msra.mxu0 %v161
    %270 = vmatprep.subr.mxu0 0.0
    %271 = vmatpush1.msra.mxu0 0.0
    %272 = vmatprep.subr.mxu0 0.0
    %273 = vmatpush1.msra.mxu0 0.0
    %274 = vmatprep.subr.mxu0 0.0
    %275 = vmatpush1.msra.mxu0 0.0
    %276 = vmatprep.subr.mxu0 0.0
    %277 = vmatpush1.msra.mxu0 0.0
    %278 = vmatprep.subr.mxu0 0.0
    %279 = vmatpush1.msra.mxu0 0.0
    %280 = vmatprep.subr.mxu0 0.0
    %281 = vmatpush1.msra.mxu0 0.0
    %282 = vmatprep.subr.mxu0 0.0
    %283 = vmatpush1.msra.mxu0 0.0
    %284 = vmatprep.subr.mxu0 0.0
    %285 = vmatpush1.msra.mxu0 0.0
    %286 = vmatprep.subr.mxu0 0.0
    %287 = vmatpush1.msra.mxu0 0.0
    %288 = vmatprep.subr.mxu0 0.0
    %289 = vmatpush1.msra.mxu0 0.0
    %290 = vmatprep.subr.mxu0 0.0
    %291 = vmatpush1.msra.mxu0 0.0
    %292 = vmatprep.subr.mxu0 0.0
    %293 = vmatpush1.msra.mxu0 0.0
    %294 = vmatprep.subr.mxu0 0.0
    %295 = vmatpush1.msra.mxu0 0.0
    %296 = vmatprep.subr.mxu0 0.0
    %297 = vmatpush1.msra.mxu0 0.0
    %298 = vmatprep.subr.mxu0 0.0
    %299 = vmatpush1.msra.mxu0 0.0
    %300 = vmatprep.subr.mxu0 0.0
    %301 = vmatpush1.msra.mxu0 0.0
    %302 = vmatprep.subr.mxu0 0.0
    %303 = vmatpush1.msra.mxu0 0.0
    %304 = vmatprep.subr.mxu0 0.0
    %305 = vmatpush1.msra.mxu0 0.0
    %306 = vmatprep.subr.mxu0 0.0
    %307 = vmatpush1.msra.mxu0 0.0
    %308 = vmatprep.subr.mxu0 0.0
    %309 = vmatpush1.msra.mxu0 0.0
    %310 = vmatprep.subr.mxu0 0.0
    %311 = vmatpush1.msra.mxu0 0.0
    %312 = vmatprep.subr.mxu0 0.0
    %313 = vmatpush1.msra.mxu0 0.0
    %314 = vmatprep.subr.mxu0 0.0
    %315 = vmatpush1.msra.mxu0 0.0
    %316 = vmatprep.subr.mxu0 0.0
    %317 = vmatpush1.msra.mxu0 0.0
    %318 = vmatprep.subr.mxu0 0.0
    %319 = vmatpush1.msra.mxu0 0.0
    %320 = vmatprep.subr.mxu0 0.0
    %321 = vmatpush1.msra.mxu0 0.0
    %322 = vmatprep.subr.mxu0 0.0
    %323 = vmatpush1.msra.mxu0 0.0
    %324 = vmatprep.subr.mxu0 0.0
    %325 = vmatpush1.msra.mxu0 0.0
    %326 = vmatprep.mubr.f32.mxu0 0.0
    %327 = vmatmul.mubr.f32.gmra.mrb[0].mxu0 %v254
    %v328 = vpop.f32.mrb[0].mxu0
    %v329 = vadd.f32 %v167, %v328
    %v330 = vpop.f32.mrb[0].mxu0
    %331 = vmatprep.mubr.f32.mxu0 0.0
    %332 = vmatmul.mubr.f32.gmra.mrb[0].mxu0 %v256
    %v333 = vpop.f32.mrb[0].mxu0
    %v334 = vadd.f32 %v167, %v333
    %v335 = vpop.f32.mrb[0].mxu0
    %336 = vmatprep.mubr.f32.mxu0 0.0
    %337 = vmatmul.mubr.f32.gmra.mrb[0].mxu0 %v258
    %v338 = vpop.f32.mrb[0].mxu0
    %v339 = vadd.f32 %v167, %v338
    %v340 = vpop.f32.mrb[0].mxu0
    %341 = vmatprep.mubr.f32.mxu0 0.0
    %342 = vmatmul.mubr.f32.gmra.mrb[0].mxu0 %v260
    %v343 = vpop.f32.mrb[0].mxu0
    %v344 = vadd.f32 %v167, %v343
    %v345 = vpop.f32.mrb[0].mxu0
    %346 = vdwg.mxu0
    %v351 = vcombine.high %v329, %v329
    %v353 = vunpack.c.l.s4 1983009808
    %v354 = vunpack.c.0.s8 %v353
    %v355 = vlaneseq
    %v356 = vshrl.u32 %v355, 7
    %v357 = vsub.s32 %v354, %v356
    %v358 = vrot.slane %v329, %v357
    %v360 = vunpack.c.l.s4 1983009808
    %v361 = vunpack.c.0.s8 %v360
    %v362 = vlaneseq
    %v363 = vshrl.u32 %v362, 7
    %v364 = vsub.s32 %v361, %v363
    %v365 = vrot.slane %v351, %v364
    %v366 = vcombine.high %v358, %v358
    %v367 = vcombine.high %v365, %v365
    %v368 = vcombine.high %v334, %v334
    %v370 = vunpack.c.l.s4 1983009808
    %v371 = vunpack.c.0.s8 %v370
    %v372 = vlaneseq
    %v373 = vshrl.u32 %v372, 7
    %v374 = vsub.s32 %v371, %v373
    %v375 = vrot.slane %v334, %v374
    %v377 = vunpack.c.l.s4 1983009808
    %v378 = vunpack.c.0.s8 %v377
    %v379 = vlaneseq
    %v380 = vshrl.u32 %v379, 7
    %v381 = vsub.s32 %v378, %v380
    %v382 = vrot.slane %v368, %v381
    %v383 = vcombine.high %v375, %v375
    %v384 = vcombine.high %v382, %v382
    %v385 = vcombine.high %v339, %v339
    %v387 = vunpack.c.l.s4 1983009808
    %v388 = vunpack.c.0.s8 %v387
    %v389 = vlaneseq
    %v390 = vshrl.u32 %v389, 7
    %v391 = vsub.s32 %v388, %v390
    %v392 = vrot.slane %v339, %v391
    %v394 = vunpack.c.l.s4 1983009808
    %v395 = vunpack.c.0.s8 %v394
    %v396 = vlaneseq
    %v397 = vshrl.u32 %v396, 7
    %v398 = vsub.s32 %v395, %v397
    %v399 = vrot.slane %v385, %v398
    %v400 = vcombine.high %v392, %v392
    %v401 = vcombine.high %v399, %v399
    %v402 = vcombine.high %v344, %v344
    %v404 = vunpack.c.l.s4 1983009808
    %v405 = vunpack.c.0.s8 %v404
    %v406 = vlaneseq
    %v407 = vshrl.u32 %v406, 7
    %v408 = vsub.s32 %v405, %v407
    %v409 = vrot.slane %v344, %v408
    %v411 = vunpack.c.l.s4 1983009808
    %v412 = vunpack.c.0.s8 %v411
    %v413 = vlaneseq
    %v414 = vshrl.u32 %v413, 7
    %v415 = vsub.s32 %v412, %v414
    %v416 = vrot.slane %v402, %v415
    %v417 = vcombine.high %v409, %v409
    %v418 = vcombine.high %v416, %v416
    %vm435 = vcmask 517120
    %436 = vst.msk [vmem:[#allocation2] sm:$0x3] %vm435, %v358
    %437 = vst.msk [vmem:[#allocation2 + $0x2] sm:$0x3] %vm435, %v366
    %438 = vst.msk [vmem:[#allocation2 + $0x4] sm:$0x3] %vm435, %v365
    %439 = vst.msk [vmem:[#allocation2 + $0x6] sm:$0x3] %vm435, %v367
    %440 = vst.msk [vmem:[#allocation2 + $0x8] sm:$0x3] %vm435, %v375
    %441 = vst.msk [vmem:[#allocation2 + $0xa] sm:$0x3] %vm435, %v383
    %442 = vst.msk [vmem:[#allocation2 + $0xc] sm:$0x3] %vm435, %v382
    %443 = vst.msk [vmem:[#allocation2 + $0xe] sm:$0x3] %vm435, %v384
    %444 = vst.msk [vmem:[#allocation2 + $0x10] sm:$0x3] %vm435, %v392
    %445 = vst.msk [vmem:[#allocation2 + $0x12] sm:$0x3] %vm435, %v400
    %446 = vst.msk [vmem:[#allocation2 + $0x14] sm:$0x3] %vm435, %v399
    %447 = vst.msk [vmem:[#allocation2 + $0x16] sm:$0x3] %vm435, %v401
    %448 = vst.msk [vmem:[#allocation2 + $0x18] sm:$0x3] %vm435, %v409
    %449 = vst.msk [vmem:[#allocation2 + $0x1a] sm:$0x3] %vm435, %v417
    %450 = vst.msk [vmem:[#allocation2 + $0x1c] sm:$0x3] %vm435, %v416
    %451 = vst.msk [vmem:[#allocation2 + $0x1e] sm:$0x3] %vm435, %v418
    %v452 = vld [vmem:[#allocation15] sm:$0xff]
    %v453 = vld [vmem:[#allocation15 + $0x8] sm:$0xff]
    %v454 = vld [vmem:[#allocation15 + $0x10] sm:$0xff]
    %v455 = vld [vmem:[#allocation15 + $0x18] sm:$0xff]
    %v456 = vld [vmem:[#allocation18] sm:$0x1]
    %v458 = vlaneseq
    %v459 = vshrl.u32 %v458, 7
    %v460 = vsub.s32 0, %v459
    %v461 = vrot.slane %v456, %v460
    %463 = vmatprep.subr.mxu0 0.0
    %464 = vmatpush1.msra.mxu0 %v452
    %465 = vmatprep.subr.mxu0 0.0
    %466 = vmatpush1.msra.mxu0 %v453
    %467 = vmatprep.subr.mxu0 0.0
    %468 = vmatpush1.msra.mxu0 %v454
    %469 = vmatprep.subr.mxu0 0.0
    %470 = vmatpush1.msra.mxu0 %v455
    %471 = vmatprep.subr.mxu0 0.0
    %472 = vmatpush1.msra.mxu0 0.0
    %473 = vmatprep.subr.mxu0 0.0
    %474 = vmatpush1.msra.mxu0 0.0
    %475 = vmatprep.subr.mxu0 0.0
    %476 = vmatpush1.msra.mxu0 0.0
    %477 = vmatprep.subr.mxu0 0.0
    %478 = vmatpush1.msra.mxu0 0.0
    %479 = vmatprep.subr.mxu0 0.0
    %480 = vmatpush1.msra.mxu0 0.0
    %481 = vmatprep.subr.mxu0 0.0
    %482 = vmatpush1.msra.mxu0 0.0
    %483 = vmatprep.subr.mxu0 0.0
    %484 = vmatpush1.msra.mxu0 0.0
    %485 = vmatprep.subr.mxu0 0.0
    %486 = vmatpush1.msra.mxu0 0.0
    %487 = vmatprep.subr.mxu0 0.0
    %488 = vmatpush1.msra.mxu0 0.0
    %489 = vmatprep.subr.mxu0 0.0
    %490 = vmatpush1.msra.mxu0 0.0
    %491 = vmatprep.subr.mxu0 0.0
    %492 = vmatpush1.msra.mxu0 0.0
    %493 = vmatprep.subr.mxu0 0.0
    %494 = vmatpush1.msra.mxu0 0.0
    %495 = vmatprep.subr.mxu0 0.0
    %496 = vmatpush1.msra.mxu0 0.0
    %497 = vmatprep.subr.mxu0 0.0
    %498 = vmatpush1.msra.mxu0 0.0
    %499 = vmatprep.subr.mxu0 0.0
    %500 = vmatpush1.msra.mxu0 0.0
    %501 = vmatprep.subr.mxu0 0.0
    %502 = vmatpush1.msra.mxu0 0.0
    %503 = vmatprep.subr.mxu0 0.0
    %504 = vmatpush1.msra.mxu0 0.0
    %505 = vmatprep.subr.mxu0 0.0
    %506 = vmatpush1.msra.mxu0 0.0
    %507 = vmatprep.subr.mxu0 0.0
    %508 = vmatpush1.msra.mxu0 0.0
    %509 = vmatprep.subr.mxu0 0.0
    %510 = vmatpush1.msra.mxu0 0.0
    %511 = vmatprep.subr.mxu0 0.0
    %512 = vmatpush1.msra.mxu0 0.0
    %513 = vmatprep.subr.mxu0 0.0
    %514 = vmatpush1.msra.mxu0 0.0
    %515 = vmatprep.subr.mxu0 0.0
    %516 = vmatpush1.msra.mxu0 0.0
    %517 = vmatprep.subr.mxu0 0.0
    %518 = vmatpush1.msra.mxu0 0.0
    %519 = vmatprep.subr.mxu0 0.0
    %520 = vmatpush1.msra.mxu0 0.0
    %521 = vmatprep.subr.mxu0 0.0
    %522 = vmatpush1.msra.mxu0 0.0
    %523 = vmatprep.subr.mxu0 0.0
    %524 = vmatpush1.msra.mxu0 0.0
    %525 = vmatprep.subr.mxu0 0.0
    %526 = vmatpush1.msra.mxu0 0.0
    %527 = vmatprep.mubr.f32.mxu0 0.0
    %528 = vmatmul.mubr.f32.gmra.mrb[0].mxu0 %v254
    %v529 = vpop.f32.mrb[0].mxu0
    %v530 = vadd.f32 %v461, %v529
    %v531 = vpop.f32.mrb[0].mxu0
    %532 = vmatprep.mubr.f32.mxu0 0.0
    %533 = vmatmul.mubr.f32.gmra.mrb[0].mxu0 %v256
    %v534 = vpop.f32.mrb[0].mxu0
    %v535 = vadd.f32 %v461, %v534
    %v536 = vpop.f32.mrb[0].mxu0
    %537 = vmatprep.mubr.f32.mxu0 0.0
    %538 = vmatmul.mubr.f32.gmra.mrb[0].mxu0 %v258
    %v539 = vpop.f32.mrb[0].mxu0
    %v540 = vadd.f32 %v461, %v539
    %v541 = vpop.f32.mrb[0].mxu0
    %542 = vmatprep.mubr.f32.mxu0 0.0
    %543 = vmatmul.mubr.f32.gmra.mrb[0].mxu0 %v260
    %v544 = vpop.f32.mrb[0].mxu0
    %v545 = vadd.f32 %v461, %v544
    %v546 = vpop.f32.mrb[0].mxu0
    %547 = vdwg.mxu0
    %v552 = vcombine.high %v530, %v530
    %v554 = vunpack.c.l.s4 1983009808
    %v555 = vunpack.c.0.s8 %v554
    %v556 = vlaneseq
    %v557 = vshrl.u32 %v556, 7
    %v558 = vsub.s32 %v555, %v557
    %v559 = vrot.slane %v530, %v558
    %v561 = vunpack.c.l.s4 1983009808
    %v562 = vunpack.c.0.s8 %v561
    %v563 = vlaneseq
    %v564 = vshrl.u32 %v563, 7
    %v565 = vsub.s32 %v562, %v564
    %v566 = vrot.slane %v552, %v565
    %v567 = vcombine.high %v559, %v559
    %v568 = vcombine.high %v566, %v566
    %v569 = vcombine.high %v535, %v535
    %v571 = vunpack.c.l.s4 1983009808
    %v572 = vunpack.c.0.s8 %v571
    %v573 = vlaneseq
    %v574 = vshrl.u32 %v573, 7
    %v575 = vsub.s32 %v572, %v574
    %v576 = vrot.slane %v535, %v575
    %v578 = vunpack.c.l.s4 1983009808
    %v579 = vunpack.c.0.s8 %v578
    %v580 = vlaneseq
    %v581 = vshrl.u32 %v580, 7
    %v582 = vsub.s32 %v579, %v581
    %v583 = vrot.slane %v569, %v582
    %v584 = vcombine.high %v576, %v576
    %v585 = vcombine.high %v583, %v583
    %v586 = vcombine.high %v540, %v540
    %v588 = vunpack.c.l.s4 1983009808
    %v589 = vunpack.c.0.s8 %v588
    %v590 = vlaneseq
    %v591 = vshrl.u32 %v590, 7
    %v592 = vsub.s32 %v589, %v591
    %v593 = vrot.slane %v540, %v592
    %v595 = vunpack.c.l.s4 1983009808
    %v596 = vunpack.c.0.s8 %v595
    %v597 = vlaneseq
    %v598 = vshrl.u32 %v597, 7
    %v599 = vsub.s32 %v596, %v598
    %v600 = vrot.slane %v586, %v599
    %v601 = vcombine.high %v593, %v593
    %v602 = vcombine.high %v600, %v600
    %v603 = vcombine.high %v545, %v545
    %v605 = vunpack.c.l.s4 1983009808
    %v606 = vunpack.c.0.s8 %v605
    %v607 = vlaneseq
    %v608 = vshrl.u32 %v607, 7
    %v609 = vsub.s32 %v606, %v608
    %v610 = vrot.slane %v545, %v609
    %v612 = vunpack.c.l.s4 1983009808
    %v613 = vunpack.c.0.s8 %v612
    %v614 = vlaneseq
    %v615 = vshrl.u32 %v614, 7
    %v616 = vsub.s32 %v613, %v615
    %v617 = vrot.slane %v603, %v616
    %v618 = vcombine.high %v610, %v610
    %v619 = vcombine.high %v617, %v617
    %636 = vst.msk [vmem:[#allocation3] sm:$0x3] %vm435, %v559
    %637 = vst.msk [vmem:[#allocation3 + $0x2] sm:$0x3] %vm435, %v567
    %638 = vst.msk [vmem:[#allocation3 + $0x4] sm:$0x3] %vm435, %v566
    %639 = vst.msk [vmem:[#allocation3 + $0x6] sm:$0x3] %vm435, %v568
    %640 = vst.msk [vmem:[#allocation3 + $0x8] sm:$0x3] %vm435, %v576
    %641 = vst.msk [vmem:[#allocation3 + $0xa] sm:$0x3] %vm435, %v584
    %642 = vst.msk [vmem:[#allocation3 + $0xc] sm:$0x3] %vm435, %v583
    %643 = vst.msk [vmem:[#allocation3 + $0xe] sm:$0x3] %vm435, %v585
    %644 = vst.msk [vmem:[#allocation3 + $0x10] sm:$0x3] %vm435, %v593
    %645 = vst.msk [vmem:[#allocation3 + $0x12] sm:$0x3] %vm435, %v601
    %646 = vst.msk [vmem:[#allocation3 + $0x14] sm:$0x3] %vm435, %v600
    %647 = vst.msk [vmem:[#allocation3 + $0x16] sm:$0x3] %vm435, %v602
    %648 = vst.msk [vmem:[#allocation3 + $0x18] sm:$0x3] %vm435, %v610
    %649 = vst.msk [vmem:[#allocation3 + $0x1a] sm:$0x3] %vm435, %v618
    %650 = vst.msk [vmem:[#allocation3 + $0x1c] sm:$0x3] %vm435, %v617
    %651 = vst.msk [vmem:[#allocation3 + $0x1e] sm:$0x3] %vm435, %v619
    loop: start=0, step=1, limit=16
    $region66: #{conv_lstm_linear_forward.4} parent=1 // loop_pre_header
      _
    $region67: #{conv_lstm_linear_forward.4} parent=1 // loop_header
      %s653 = sphi 0, %s657
      %p654 = scmp.ge.s32.totalorder %s653, 16
      %v658 = vphi 0.0, %v781
      %v659 = vphi 0.0, %v784
      %v660 = vphi 0.0, %v912
      %v661 = vphi 0.0, %v915
    $region68: #{conv_lstm_linear_forward.4} parent=1 // loop_header_branch
      %656 = sbr.rel (%p654) target = $region72
    $region69: #{conv_lstm_linear_forward.4} parent=1 // loop_body
      %s662 = smul.u32 %s653, 2
      %s663 = scalar_lea.vmem [#allocation9], %s662
      %v664 = vld [vmem:[%s663] sm:$0x3]
      %s665 = scalar_lea.vmem [#allocation2], %s662
      %v666 = vld [vmem:[%s665] sm:$0x3]
      %668 = vrot.lane.b32.xlu0 %v658, 80
      %v669 = vpop.permute.xlu0 %668
      %vm670 = vcmask 130048
      %v671 = vsel %vm670, %v669, 0
      %673 = vmatprep.subr.mxu0 0.0
      %674 = vmatpush1.msra.mxu0 %v138
      %675 = vmatprep.subr.mxu0 0.0
      %676 = vmatpush1.msra.mxu0 %v139
      %677 = vmatprep.subr.mxu0 0.0
      %678 = vmatpush1.msra.mxu0 0.0
      %679 = vmatprep.subr.mxu0 0.0
      %680 = vmatpush1.msra.mxu0 0.0
      %681 = vmatprep.subr.mxu0 0.0
      %682 = vmatpush1.msra.mxu0 0.0
      %683 = vmatprep.subr.mxu0 0.0
      %684 = vmatpush1.msra.mxu0 0.0
      %685 = vmatprep.subr.mxu0 0.0
      %686 = vmatpush1.msra.mxu0 0.0
      %687 = vmatprep.subr.mxu0 0.0
      %688 = vmatpush1.msra.mxu0 0.0
      %689 = vmatprep.subr.mxu0 0.0
      %690 = vmatpush1.msra.mxu0 0.0
      %691 = vmatprep.subr.mxu0 0.0
      %692 = vmatpush1.msra.mxu0 0.0
      %693 = vmatprep.subr.mxu0 0.0
      %694 = vmatpush1.msra.mxu0 0.0
      %695 = vmatprep.subr.mxu0 0.0
      %696 = vmatpush1.msra.mxu0 0.0
      %697 = vmatprep.subr.mxu0 0.0
      %698 = vmatpush1.msra.mxu0 0.0
      %699 = vmatprep.subr.mxu0 0.0
      %700 = vmatpush1.msra.mxu0 0.0
      %701 = vmatprep.subr.mxu0 0.0
      %702 = vmatpush1.msra.mxu0 0.0
      %703 = vmatprep.subr.mxu0 0.0
      %704 = vmatpush1.msra.mxu0 0.0
      %705 = vmatprep.subr.mxu0 0.0
      %706 = vmatpush1.msra.mxu0 0.0
      %707 = vmatprep.subr.mxu0 0.0
      %708 = vmatpush1.msra.mxu0 0.0
      %709 = vmatprep.subr.mxu0 0.0
      %710 = vmatpush1.msra.mxu0 0.0
      %711 = vmatprep.subr.mxu0 0.0
      %712 = vmatpush1.msra.mxu0 0.0
      %713 = vmatprep.subr.mxu0 0.0
      %714 = vmatpush1.msra.mxu0 0.0
      %715 = vmatprep.subr.mxu0 0.0
      %716 = vmatpush1.msra.mxu0 0.0
      %717 = vmatprep.subr.mxu0 0.0
      %718 = vmatpush1.msra.mxu0 0.0
      %719 = vmatprep.subr.mxu0 0.0
      %720 = vmatpush1.msra.mxu0 0.0
      %721 = vmatprep.subr.mxu0 0.0
      %722 = vmatpush1.msra.mxu0 0.0
      %723 = vmatprep.subr.mxu0 0.0
      %724 = vmatpush1.msra.mxu0 0.0
      %725 = vmatprep.subr.mxu0 0.0
      %726 = vmatpush1.msra.mxu0 0.0
      %727 = vmatprep.subr.mxu0 0.0
      %728 = vmatpush1.msra.mxu0 0.0
      %729 = vmatprep.subr.mxu0 0.0
      %730 = vmatpush1.msra.mxu0 0.0
      %731 = vmatprep.subr.mxu0 0.0
      %732 = vmatpush1.msra.mxu0 0.0
      %733 = vmatprep.subr.mxu0 0.0
      %734 = vmatpush1.msra.mxu0 0.0
      %735 = vmatprep.subr.mxu0 0.0
      %736 = vmatpush1.msra.mxu0 0.0
      %737 = vmatprep.mubr.f32.mxu0 0.0
      %738 = vmatmul.mubr.f32.gmra.mrb[0].mxu0 %v671
      %v739 = vpop.f32.mrb[0].mxu0
      %v740 = vadd.f32 0.0, %v739
      %v741 = vpop.f32.mrb[0].mxu0
      %742 = vdwg.mxu0
      %v743 = vadd.f32 %v666, %v740
      %v744 = vxor.u32 %v743, 2147483648
      %v745 = vmul.f32 %v744, 1.442695
      %v746 = vpow.pop %v745
      %v747 = vadd.f32 %v746, 1.0
      %v748 = vrcp.pop %v747
      %v749 = vmul.f32 1.0, %v748
      %v750 = vtanh.pop %v743
      %v751 = vmul.f32 %v749, %v659
      %753 = vrot.lane.b32.xlu0 %v750, 96
      %v754 = vpop.permute.xlu0 %753
      %v756 = vmul.f32 %v749, %v754
      %758 = vrot.lane.b32.xlu0 %v756, 16
      %v759 = vpop.permute.xlu0 %758
      %v761 = vadd.f32 %v751, %v759
      %v762 = vtanh.pop %v761
      %764 = vrot.lane.b32.xlu0 %v762, 32
      %v765 = vpop.permute.xlu0 %764
      %v767 = vmul.f32 %v749, %v765
      %769 = vset.pattern.permute.xlu0 0
      %770 = vperm.xlu0 %769, %v664
      %v771 = vpop.permute.xlu0 %770
      %v773 = vmul.f32 %v771, %v767
      %v774 = vsub.f32 1.0, %v664
      %776 = vset.pattern.permute.xlu0 0
      %777 = vperm.xlu0 %776, %v774
      %v778 = vpop.permute.xlu0 %777
      %v780 = vmul.f32 %v778, %v658
      %v781 = vadd.f32 %v773, %v780
      %v782 = vmul.f32 %v771, %v761
      %v783 = vmul.f32 %v778, %v659
      %v784 = vadd.f32 %v782, %v783
      %v785 = vmul.f32 %v781, %v771
      %787 = vrot.lane.b32.xlu0 %v785, 80
      %v788 = vpop.permute.xlu0 %787
      %s790 = scalar_lea.vmem [#allocation4], %s662
      %vm791 = vcmask 123904
      %792 = vst.msk [vmem:[%s790] sm:$0x3] %vm791, %v788
      %s793 = ssub.s32 15, %s653
      %s794 = smul.u32 %s793, 2
      %s795 = scalar_lea.vmem [#allocation9], %s794
      %v796 = vld [vmem:[%s795] sm:$0x3]
      %s797 = scalar_lea.vmem [#allocation3], %s794
      %v798 = vld [vmem:[%s797] sm:$0x3]
      %800 = vrot.lane.b32.xlu0 %v660, 80
      %v801 = vpop.permute.xlu0 %800
      %v802 = vsel %vm670, %v801, 0
      %804 = vmatprep.subr.mxu0 0.0
      %805 = vmatpush1.msra.mxu0 %v140
      %806 = vmatprep.subr.mxu0 0.0
      %807 = vmatpush1.msra.mxu0 %v141
      %808 = vmatprep.subr.mxu0 0.0
      %809 = vmatpush1.msra.mxu0 0.0
      %810 = vmatprep.subr.mxu0 0.0
      %811 = vmatpush1.msra.mxu0 0.0
      %812 = vmatprep.subr.mxu0 0.0
      %813 = vmatpush1.msra.mxu0 0.0
      %814 = vmatprep.subr.mxu0 0.0
      %815 = vmatpush1.msra.mxu0 0.0
      %816 = vmatprep.subr.mxu0 0.0
      %817 = vmatpush1.msra.mxu0 0.0
      %818 = vmatprep.subr.mxu0 0.0
      %819 = vmatpush1.msra.mxu0 0.0
      %820 = vmatprep.subr.mxu0 0.0
      %821 = vmatpush1.msra.mxu0 0.0
      %822 = vmatprep.subr.mxu0 0.0
      %823 = vmatpush1.msra.mxu0 0.0
      %824 = vmatprep.subr.mxu0 0.0
      %825 = vmatpush1.msra.mxu0 0.0
      %826 = vmatprep.subr.mxu0 0.0
      %827 = vmatpush1.msra.mxu0 0.0
      %828 = vmatprep.subr.mxu0 0.0
      %829 = vmatpush1.msra.mxu0 0.0
      %830 = vmatprep.subr.mxu0 0.0
      %831 = vmatpush1.msra.mxu0 0.0
      %832 = vmatprep.subr.mxu0 0.0
      %833 = vmatpush1.msra.mxu0 0.0
      %834 = vmatprep.subr.mxu0 0.0
      %835 = vmatpush1.msra.mxu0 0.0
      %836 = vmatprep.subr.mxu0 0.0
      %837 = vmatpush1.msra.mxu0 0.0
      %838 = vmatprep.subr.mxu0 0.0
      %839 = vmatpush1.msra.mxu0 0.0
      %840 = vmatprep.subr.mxu0 0.0
      %841 = vmatpush1.msra.mxu0 0.0
      %842 = vmatprep.subr.mxu0 0.0
      %843 = vmatpush1.msra.mxu0 0.0
      %844 = vmatprep.subr.mxu0 0.0
      %845 = vmatpush1.msra.mxu0 0.0
      %846 = vmatprep.subr.mxu0 0.0
      %847 = vmatpush1.msra.mxu0 0.0
      %848 = vmatprep.subr.mxu0 0.0
      %849 = vmatpush1.msra.mxu0 0.0
      %850 = vmatprep.subr.mxu0 0.0
      %851 = vmatpush1.msra.mxu0 0.0
      %852 = vmatprep.subr.mxu0 0.0
      %853 = vmatpush1.msra.mxu0 0.0
      %854 = vmatprep.subr.mxu0 0.0
      %855 = vmatpush1.msra.mxu0 0.0
      %856 = vmatprep.subr.mxu0 0.0
      %857 = vmatpush1.msra.mxu0 0.0
      %858 = vmatprep.subr.mxu0 0.0
      %859 = vmatpush1.msra.mxu0 0.0
      %860 = vmatprep.subr.mxu0 0.0
      %861 = vmatpush1.msra.mxu0 0.0
      %862 = vmatprep.subr.mxu0 0.0
      %863 = vmatpush1.msra.mxu0 0.0
      %864 = vmatprep.subr.mxu0 0.0
      %865 = vmatpush1.msra.mxu0 0.0
      %866 = vmatprep.subr.mxu0 0.0
      %867 = vmatpush1.msra.mxu0 0.0
      %868 = vmatprep.mubr.f32.mxu0 0.0
      %869 = vmatmul.mubr.f32.gmra.mrb[0].mxu0 %v802
      %v870 = vpop.f32.mrb[0].mxu0
      %v871 = vadd.f32 0.0, %v870
      %v872 = vpop.f32.mrb[0].mxu0
      %873 = vdwg.mxu0
      %v874 = vadd.f32 %v798, %v871
      %v875 = vxor.u32 %v874, 2147483648
      %v876 = vmul.f32 %v875, 1.442695
      %v877 = vpow.pop %v876
      %v878 = vadd.f32 %v877, 1.0
      %v879 = vrcp.pop %v878
      %v880 = vmul.f32 1.0, %v879
      %v881 = vtanh.pop %v874
      %v882 = vmul.f32 %v880, %v661
      %884 = vrot.lane.b32.xlu0 %v881, 96
      %v885 = vpop.permute.xlu0 %884
      %v887 = vmul.f32 %v880, %v885
      %889 = vrot.lane.b32.xlu0 %v887, 16
      %v890 = vpop.permute.xlu0 %889
      %v892 = vadd.f32 %v882, %v890
      %v893 = vtanh.pop %v892
      %895 = vrot.lane.b32.xlu0 %v893, 32
      %v896 = vpop.permute.xlu0 %895
      %v898 = vmul.f32 %v880, %v896
      %900 = vset.pattern.permute.xlu0 0
      %901 = vperm.xlu0 %900, %v796
      %v902 = vpop.permute.xlu0 %901
      %v904 = vmul.f32 %v902, %v898
      %v905 = vsub.f32 1.0, %v796
      %907 = vset.pattern.permute.xlu0 0
      %908 = vperm.xlu0 %907, %v905
      %v909 = vpop.permute.xlu0 %908
      %v911 = vmul.f32 %v909, %v660
      %v912 = vadd.f32 %v904, %v911
      %v913 = vmul.f32 %v902, %v892
      %v914 = vmul.f32 %v909, %v661
      %v915 = vadd.f32 %v913, %v914
      %v916 = vmul.f32 %v912, %v902
      %918 = vrot.lane.b32.xlu0 %v916, 80
      %v919 = vpop.permute.xlu0 %918
      %s921 = scalar_lea.vmem [#allocation5], %s794
      %922 = vst.msk [vmem:[%s921] sm:$0x3] %vm791, %v919
    $region70: #{conv_lstm_linear_forward.4} parent=1 // loop_footer
      %s657 = sadd.s32 1, %s653
    $region71: #{conv_lstm_linear_forward.4} parent=1 // loop_footer_branch
      %652 = sbr.rel target = $region67
    $region72: #{conv_lstm_linear_forward.4} parent=1 // loop_exit
      _
    %v923 = vld [vmem:[#allocation4] sm:$0x3]
    %v924 = vld [vmem:[#allocation4 + $0x2] sm:$0x3]
    %v925 = vld [vmem:[#allocation4 + $0x4] sm:$0x3]
    %v926 = vld [vmem:[#allocation4 + $0x6] sm:$0x3]
    %v927 = vld [vmem:[#allocation4 + $0x8] sm:$0x3]
    %v928 = vld [vmem:[#allocation4 + $0xa] sm:$0x3]
    %v929 = vld [vmem:[#allocation4 + $0xc] sm:$0x3]
    %v930 = vld [vmem:[#allocation4 + $0xe] sm:$0x3]
    %v931 = vld [vmem:[#allocation4 + $0x10] sm:$0x3]
    %v932 = vld [vmem:[#allocation4 + $0x12] sm:$0x3]
    %v933 = vld [vmem:[#allocation4 + $0x14] sm:$0x3]
    %v934 = vld [vmem:[#allocation4 + $0x16] sm:$0x3]
    %v935 = vld [vmem:[#allocation4 + $0x18] sm:$0x3]
    %v936 = vld [vmem:[#allocation4 + $0x1a] sm:$0x3]
    %v937 = vld [vmem:[#allocation4 + $0x1c] sm:$0x3]
    %v938 = vld [vmem:[#allocation4 + $0x1e] sm:$0x3]
    %vm939 = vcmask 123904
    %940 = vst.msk [vmem:[#allocation20] sm:$0x3] %vm939, %v923
    %941 = vst.msk [vmem:[#allocation20 + $0x2] sm:$0x3] %vm939, %v924
    %942 = vst.msk [vmem:[#allocation20 + $0x4] sm:$0x3] %vm939, %v925
    %943 = vst.msk [vmem:[#allocation20 + $0x6] sm:$0x3] %vm939, %v926
    %944 = vst.msk [vmem:[#allocation20 + $0x8] sm:$0x3] %vm939, %v927
    %945 = vst.msk [vmem:[#allocation20 + $0xa] sm:$0x3] %vm939, %v928
    %946 = vst.msk [vmem:[#allocation20 + $0xc] sm:$0x3] %vm939, %v929
    %947 = vst.msk [vmem:[#allocation20 + $0xe] sm:$0x3] %vm939, %v930
    %948 = vst.msk [vmem:[#allocation20 + $0x10] sm:$0x3] %vm939, %v931
    %949 = vst.msk [vmem:[#allocation20 + $0x12] sm:$0x3] %vm939, %v932
    %950 = vst.msk [vmem:[#allocation20 + $0x14] sm:$0x3] %vm939, %v933
    %951 = vst.msk [vmem:[#allocation20 + $0x16] sm:$0x3] %vm939, %v934
    %952 = vst.msk [vmem:[#allocation20 + $0x18] sm:$0x3] %vm939, %v935
    %953 = vst.msk [vmem:[#allocation20 + $0x1a] sm:$0x3] %vm939, %v936
    %954 = vst.msk [vmem:[#allocation20 + $0x1c] sm:$0x3] %vm939, %v937
    %955 = vst.msk [vmem:[#allocation20 + $0x1e] sm:$0x3] %vm939, %v938
    %v956 = vld [vmem:[#allocation5] sm:$0x3]
    %v957 = vld [vmem:[#allocation5 + $0x2] sm:$0x3]
    %v958 = vld [vmem:[#allocation5 + $0x4] sm:$0x3]
    %v959 = vld [vmem:[#allocation5 + $0x6] sm:$0x3]
    %v960 = vld [vmem:[#allocation5 + $0x8] sm:$0x3]
    %v961 = vld [vmem:[#allocation5 + $0xa] sm:$0x3]
    %v962 = vld [vmem:[#allocation5 + $0xc] sm:$0x3]
    %v963 = vld [vmem:[#allocation5 + $0xe] sm:$0x3]
    %v964 = vld [vmem:[#allocation5 + $0x10] sm:$0x3]
    %v965 = vld [vmem:[#allocation5 + $0x12] sm:$0x3]
    %v966 = vld [vmem:[#allocation5 + $0x14] sm:$0x3]
    %v967 = vld [vmem:[#allocation5 + $0x16] sm:$0x3]
    %v968 = vld [vmem:[#allocation5 + $0x18] sm:$0x3]
    %v969 = vld [vmem:[#allocation5 + $0x1a] sm:$0x3]
    %v970 = vld [vmem:[#allocation5 + $0x1c] sm:$0x3]
    %v971 = vld [vmem:[#allocation5 + $0x1e] sm:$0x3]
    %972 = vst.msk [vmem:[#allocation21] sm:$0x3] %vm939, %v956
    %973 = vst.msk [vmem:[#allocation21 + $0x2] sm:$0x3] %vm939, %v957
    %974 = vst.msk [vmem:[#allocation21 + $0x4] sm:$0x3] %vm939, %v958
    %975 = vst.msk [vmem:[#allocation21 + $0x6] sm:$0x3] %vm939, %v959
    %976 = vst.msk [vmem:[#allocation21 + $0x8] sm:$0x3] %vm939, %v960
    %977 = vst.msk [vmem:[#allocation21 + $0xa] sm:$0x3] %vm939, %v961
    %978 = vst.msk [vmem:[#allocation21 + $0xc] sm:$0x3] %vm939, %v962
    %979 = vst.msk [vmem:[#allocation21 + $0xe] sm:$0x3] %vm939, %v963
    %980 = vst.msk [vmem:[#allocation21 + $0x10] sm:$0x3] %vm939, %v964
    %981 = vst.msk [vmem:[#allocation21 + $0x12] sm:$0x3] %vm939, %v965
    %982 = vst.msk [vmem:[#allocation21 + $0x14] sm:$0x3] %vm939, %v966
    %983 = vst.msk [vmem:[#allocation21 + $0x16] sm:$0x3] %vm939, %v967
    %984 = vst.msk [vmem:[#allocation21 + $0x18] sm:$0x3] %vm939, %v968
    %985 = vst.msk [vmem:[#allocation21 + $0x1a] sm:$0x3] %vm939, %v969
    %986 = vst.msk [vmem:[#allocation21 + $0x1c] sm:$0x3] %vm939, %v970
    %987 = vst.msk [vmem:[#allocation21 + $0x1e] sm:$0x3] %vm939, %v971
    // Predicated region
    $region73: #{conv_lstm_linear_forward.4} parent=1 // pred_check
      _
    $region74: #{conv_lstm_linear_forward.4} parent=1 // pred_check_branch
      %989 = sbr.rel (0) target = $region76
    $region75: #{conv_lstm_linear_forward.4} parent=1 // pred_region
      %s991 = ssub.s32 512, 512
      %992 = vsyncadd [#allocation8], %s991
      %s993 = sshll.u32 [#allocation20], 4
      %s994 = int_to_ptr.vmem [resolvable:$true] %s993
      %999 = dma.vmem_to_hbm [thread:$0]  %s994, 512, %s8, [#allocation8], 32, 32, 2
    $region76: #{conv_lstm_linear_forward.4} parent=1 // pred_fallthru
      _
    // Predicated region
    $region77: #{conv_lstm_linear_forward.4} parent=1 // pred_check
      _
    $region78: #{conv_lstm_linear_forward.4} parent=1 // pred_check_branch
      %1001 = sbr.rel (0) target = $region80
    $region79: #{conv_lstm_linear_forward.4} parent=1 // pred_region
      %s1003 = ssub.s32 512, 512
      %1004 = vsyncadd [#allocation22], %s1003
      %s1005 = sshll.u32 [#allocation21], 4
      %s1006 = int_to_ptr.vmem [resolvable:$true] %s1005
      %1011 = dma.vmem_to_hbm [thread:$0]  %s1006, 512, %s9, [#allocation22], 32, 32, 2
    $region80: #{conv_lstm_linear_forward.4} parent=1 // pred_fallthru
      _
    // Predicated region
    $region81: #{conv_lstm_linear_forward.4} parent=1 // pred_check
      _
    $region82: #{conv_lstm_linear_forward.4} parent=1 // pred_check_branch
      %1013 = sbr.rel (0) target = $region84
    $region83: #{conv_lstm_linear_forward.4} parent=1 // pred_region
      %1014 = dma.done [#allocation8], 512
    $region84: #{conv_lstm_linear_forward.4} parent=1 // pred_fallthru
      _
    // Predicated region
    $region85: #{conv_lstm_linear_forward.4} parent=1 // pred_check
      _
    $region86: #{conv_lstm_linear_forward.4} parent=1 // pred_check_branch
      %1016 = sbr.rel (0) target = $region88
    $region87: #{conv_lstm_linear_forward.4} parent=1 // pred_region
      %1017 = dma.done [#allocation22], 512
    $region88: #{conv_lstm_linear_forward.4} parent=1 // pred_fallthru
      _
    %1018 = vsyncpa [#allocation7], 1
    %1019 = vsyncpa [#allocation10], 1
    %1020 = vsyncpa [#allocation13], 1
    %1021 = vsyncpa [#allocation16], 1
    %1022 = vsyncpa [#allocation19], 1
    %1023 = vsyncpa [#allocation8], 1
    %1024 = vsyncpa [#allocation22], 1

</llo_original>
